<compile_context>
chip_gen: v7x
topology: tpu7x:2x2x1
jax: 0.10.0
libtpu: 0.0.40
codegen_flags: <defaults>
</compile_context>

<pallas_src>
import jax
import jax.numpy as jnp
from jax import lax
from jax.experimental import pallas as pl
from jax.experimental.pallas import tpu as pltpu

# ---- static configuration (small synthetic sizes consistent with the module) ----
H, W = 8, 8              # decoder resolution
HW = H * W
D = 32                   # slot feature dim (n_features)
C1, C2 = 32, 32          # backbone conv channels; backbone.features[-1] == C2
KH, KW = 3, 3            # conv kernel size (SAME padding, stride 1)
TAPS = KH * KW           # 9

assert D == C1, "the shared im2col patch scratch is reused; keep TAPS*D == TAPS*C1"


def _decoder_kernel(slot_ref, sel_ref, valid_ref, posc1_ref, w1t_ref, w2t_ref,
                    consts_ref, bb_ref, alpha_ref, patch_ref):
    m = sel_ref.shape[1]                              # BS_BLOCK * H * W (lane-dense)

    b1 = consts_ref[:, 0:1]                           # (C1, 1)
    b2 = consts_ref[:, 1:2]                           # (C2, 1)
    wm = consts_ref[:, 2:3]                           # (C2, 1)
    bm = consts_ref[0:1, 3:4]                         # (1, 1)

    # ---------------------------------------------------------------------
    # 1) layer 1: conv3x3(spatial_broadcast(slot) + pos_emb) + ReLU.
    #    conv1 is linear, so conv1(pos_emb) is a precomputed constant
    #    (posc1_ref); the slot part's im2col matrix is, per tap,
    #    valid[tap, m] * slot[c, b(m)].  The spatial broadcast is one tiny
    #    selector matmul producing a lane-dense (D, M) slab.
    # ---------------------------------------------------------------------
    slot_b = jnp.dot(slot_ref[0], sel_ref[...],
                     preferred_element_type=jnp.float32)          # (D, M)
    for tap in range(TAPS):
        v = valid_ref[pl.ds(tap, 1), :]                           # (1, M)
        patch_ref[pl.ds(tap * D, D), :] = v * slot_b              # (D, M) slab

    h1 = jnp.dot(w1t_ref[...], patch_ref[...],
                 preferred_element_type=jnp.float32)              # (C1, M), K=288
    h1 = jnp.maximum(h1 + b1 + posc1_ref[...], 0.0)

    # ---------------------------------------------------------------------
    # 2) layer 2: conv3x3(h1) + ReLU.  im2col taps come from lane rolls of h1
    #    plus the same per-tap validity masks (the mask also zeroes every
    #    wrap-around position, including across slot-block boundaries).
    # ---------------------------------------------------------------------
    for tap in range(TAPS):
        oy, ox = tap // KW - 1, tap % KW - 1
        if oy == 0 and ox == 0:
            patch_ref[pl.ds(tap * C1, C1), :] = h1
        else:
            shift = (-(oy * W + ox)) % m
            rolled = pltpu.roll(h1, shift=shift, axis=1)          # XLU lane roll
            patch_ref[pl.ds(tap * C1, C1), :] = valid_ref[pl.ds(tap, 1), :] * rolled

    bb = jnp.dot(w2t_ref[...], patch_ref[...],
                 preferred_element_type=jnp.float32)              # (C2, M), K=288
    bb = jnp.maximum(bb + b2, 0.0)
    bb_ref[...] = bb                                              # lane-dense store

    # ---------------------------------------------------------------------
    # 3) mask_pred: Linear(C2 -> 1) as a weighted cross-sublane reduction,
    #    producing a lane-dense (1, M) row.
    # ---------------------------------------------------------------------
    alpha_ref[...] = jnp.sum(bb * wm, axis=0, keepdims=True) + bm


def _prep_constants(params, bs_block):
    """One-time parameter / constant layout plumbing (plain JAX)."""
    m = bs_block * HW

    # im2col weights, transposed so the GEMMs produce (C, M) lane-dense results.
    w1t = params["w1"].reshape(TAPS * D, C1).T                    # (C1, TAPS*D)
    w2t = params["w2"].reshape(TAPS * C1, C2).T                   # (C2, TAPS*C1)

    # conv1 applied to the (input-independent) positional embedding, no bias.
    posc1 = lax.conv_general_dilated(
        params["pos_emb"][None], params["w1"], window_strides=(1, 1),
        padding="SAME", dimension_numbers=("NHWC", "HWIO", "NHWC"))[0]  # (H, W, C1)
    posc1 = jnp.tile(posc1.reshape(HW, C1).T, (1, bs_block))      # (C1, M)

    # per-tap SAME-padding validity masks, tiled across the slot block.
    yy, xx = jnp.meshgrid(jnp.arange(H), jnp.arange(W), indexing="ij")
    rows = []
    for dy in range(KH):
        for dx in range(KW):
            oy, ox = dy - 1, dx - 1
            v = ((yy + oy >= 0) & (yy + oy < H) & (xx + ox >= 0) & (xx + ox < W))
            rows.append(jnp.tile(v.astype(jnp.float32).reshape(HW), bs_block))
    valid = jnp.stack(rows, axis=0)                               # (TAPS, M)

    # slot-block selector: sel[b, b*HW + p] = 1  (spatial broadcast via MXU).
    sel = jnp.repeat(jnp.eye(bs_block, dtype=jnp.float32), HW, axis=1)  # (BS_BLOCK, M)

    # merged small constants: columns = [b1 | b2 | wm | bm] in one padded tile.
    consts = jnp.zeros((C1, 4), jnp.float32)
    consts = consts.at[:, 0].set(params["b1"].reshape(C1))
    consts = consts.at[:, 1].set(params["b2"].reshape(C2))
    consts = consts.at[:, 2].set(params["wm"].reshape(C2))
    consts = consts.at[0, 3].set(params["bm"].reshape(()))
    return w1t, w2t, posc1, valid, sel, consts


def spatial_broadcast_mask_decoder(slots, params, *, num_steps=2):
    """slots: (batch, n_slots, D). Returns (bb_features, alpha_logits).

    num_steps: grid length.  Use 1 on single-TC chips (v5e/v6e), >=2 on v7x so
    both TensorCores get a ("parallel") step.
    """
    batch, n_slots, d = slots.shape
    assert d == D
    bs = batch * n_slots
    assert bs % num_steps == 0, "demo wrapper assumes batch*n_slots % num_steps == 0"
    bs_block = bs // num_steps
    m = bs_block * HW
    nblk = num_steps

    # slots pre-transposed so the kernel gets (D, BS_BLOCK) directly.
    slots_t = slots.reshape(nblk, bs_block, D).transpose(0, 2, 1)  # (nblk, D, BS_BLOCK)
    w1t, w2t, posc1, valid, sel, consts = _prep_constants(params, bs_block)

    grid_spec = pltpu.PrefetchScalarGridSpec(
        num_scalar_prefetch=0,
        grid=(nblk,),
        in_specs=[
            pl.BlockSpec((1, D, bs_block), lambda i: (i, 0, 0)),   # slot block (D, BS_BLOCK)
            pl.BlockSpec((bs_block, m), lambda i: (0, 0)),         # broadcast selector
            pl.BlockSpec((TAPS, m), lambda i: (0, 0)),             # per-tap validity masks
            pl.BlockSpec((C1, m), lambda i: (0, 0)),               # conv1(pos_emb), tiled
            pl.BlockSpec((C1, TAPS * D), lambda i: (0, 0)),        # conv1 weights (transposed im2col)
            pl.BlockSpec((C2, TAPS * C1), lambda i: (0, 0)),       # conv2 weights (transposed im2col)
            pl.BlockSpec((C1, 4), lambda i: (0, 0)),               # merged b1|b2|wm|bm
        ],
        out_specs=[
            pl.BlockSpec((C2, m), lambda i: (0, i)),               # bb features (C2, M) blocks
            pl.BlockSpec((1, m), lambda i: (0, i)),                # alpha logits (lane-dense)
        ],
        scratch_shapes=[
            pltpu.VMEM((TAPS * D, m), jnp.float32),                # shared im2col patch (both layers)
        ],
    )

    bb_t, alpha_t = pl.pallas_call(
        _decoder_kernel,
        out_shape=(
            jax.ShapeDtypeStruct((C2, bs * HW), jnp.float32),
            jax.ShapeDtypeStruct((1, bs * HW), jnp.float32),
        ),
        grid_spec=grid_spec,
        compiler_params=pltpu.CompilerParams(
            dimension_semantics=("parallel",)),
    )(slots_t, sel, valid, posc1, w1t, w2t, consts)

    # wrapper-side layout plumbing (free): back to module output shapes
    bb_features = bb_t.T.reshape(bs, H, W, C2)                    # (batch*n_slots, H, W, C2)
    alpha_logits = alpha_t.reshape(batch, n_slots, H, W, 1)
    return bb_features, alpha_logits


def _reference(slots, params):
    """Pure-JAX reference of the same forward pass (for verification)."""
    batch, n_slots, d = slots.shape
    bs = batch * n_slots
    x = slots.reshape(bs, d)
    x = jnp.broadcast_to(x[:, None, None, :], (bs, H, W, d))      # spatial broadcast
    x = x + params["pos_emb"][None]                               # additive pos emb

    def conv_relu(inp, w, b):
        y = lax.conv_general_dilated(
            inp, w, window_strides=(1, 1), padding="SAME",
            dimension_numbers=("NHWC", "HWIO", "NHWC"))
        return jnp.maximum(y + b.reshape(1, 1, 1, -1), 0.0)

    h = conv_relu(x, params["w1"], params["b1"])
    bb = conv_relu(h, params["w2"], params["b2"])
    alpha = bb.reshape(-1, C2) @ params["wm"] + params["bm"].reshape(())
    alpha = alpha.reshape(batch, n_slots, H, W, 1)
    return bb, alpha


if __name__ == "__main__":
    key = jax.random.PRNGKey(0)
    keys = jax.random.split(key, 8)
    batch, n_slots = 2, 4

    slots = jax.random.normal(keys[0], (batch, n_slots, D), jnp.float32)

    # Position embedding setup (plain JAX): normalized coordinate grid -> Dense(4, D)
    ys = (jnp.arange(H, dtype=jnp.float32) + 0.5) / H
    xs = (jnp.arange(W, dtype=jnp.float32) + 0.5) / W
    gy, gx = jnp.meshgrid(ys, xs, indexing="ij")
    grid4 = jnp.stack([gy, gx, 1.0 - gy, 1.0 - gx], axis=-1)      # (H, W, 4)
    w_pos = jax.random.normal(keys[1], (4, D), jnp.float32) * 0.1
    pos_emb = (grid4.reshape(-1, 4) @ w_pos).reshape(H, W, D)

    params = dict(
        pos_emb=pos_emb,
        w1=jax.random.normal(keys[2], (KH, KW, D, C1), jnp.float32) * 0.05,
        b1=jax.random.normal(keys[3], (1, C1), jnp.float32) * 0.01,
        w2=jax.random.normal(keys[4], (KH, KW, C1, C2), jnp.float32) * 0.05,
        b2=jax.random.normal(keys[5], (1, C2), jnp.float32) * 0.01,
        wm=jax.random.normal(keys[6], (C2, 1), jnp.float32) * 0.1,
        bm=jax.random.normal(keys[7], (1, 1), jnp.float32) * 0.01,
    )

    # num_steps=2 keeps both v7x TensorCores busy; on v5e/v6e use num_steps=1.
    bb, alpha = spatial_broadcast_mask_decoder(slots, params, num_steps=2)
    jax.block_until_ready((bb, alpha))

    bb_ref, alpha_ref = _reference(slots, params)
    assert bb.shape == (batch * n_slots, H, W, C2)
    assert alpha.shape == (batch, n_slots, H, W, 1)
    assert jnp.allclose(bb, bb_ref, atol=1e-4, rtol=1e-4)
    assert jnp.allclose(alpha, alpha_ref, atol=1e-4, rtol=1e-4)

    print("KERNEL_OK")
</pallas_src>

<mosaic_0001>
module attributes {stable_mosaic.version = 11 : i64} {
  func.func @_decoder_kernel(%arg0: i32, %arg1: memref<1x32x4xf32, #tpu.memory_space<vmem>>, %arg2: memref<4x256xf32, #tpu.memory_space<vmem>>, %arg3: memref<9x256xf32, #tpu.memory_space<vmem>>, %arg4: memref<32x256xf32, #tpu.memory_space<vmem>>, %arg5: memref<32x288xf32, #tpu.memory_space<vmem>>, %arg6: memref<32x288xf32, #tpu.memory_space<vmem>>, %arg7: memref<32x4xf32, #tpu.memory_space<vmem>>, %arg8: memref<32x256xf32, #tpu.memory_space<vmem>>, %arg9: memref<1x256xf32, #tpu.memory_space<vmem>>, %arg10: memref<288x256xf32, #tpu.memory_space<vmem>>) attributes {dimension_semantics = [#tpu.dimension_semantics<parallel>], iteration_bounds = array<i64: 2>, scalar_prefetch = 0 : i64, scratch_operands = 1 : i64, tpu.core_type = #tpu.core_type<tc>, window_params = [{transform_indices = @transform_0, window_bounds = array<i64: 1, 32, 4>}, {pipeline_mode = #tpu.pipeline_mode<synchronous>, transform_indices = @transform_1, window_bounds = array<i64: 4, 256>}, {pipeline_mode = #tpu.pipeline_mode<synchronous>, transform_indices = @transform_2, window_bounds = array<i64: 9, 256>}, {pipeline_mode = #tpu.pipeline_mode<synchronous>, transform_indices = @transform_3, window_bounds = array<i64: 32, 256>}, {pipeline_mode = #tpu.pipeline_mode<synchronous>, transform_indices = @transform_4, window_bounds = array<i64: 32, 288>}, {pipeline_mode = #tpu.pipeline_mode<synchronous>, transform_indices = @transform_5, window_bounds = array<i64: 32, 288>}, {pipeline_mode = #tpu.pipeline_mode<synchronous>, transform_indices = @transform_6, window_bounds = array<i64: 32, 4>}, {transform_indices = @transform_7, window_bounds = array<i64: 32, 256>}, {transform_indices = @transform_8, window_bounds = array<i64: 1, 256>}]} {
    %c0 = arith.constant 0 : index
    %c0_0 = arith.constant 0 : index
    %0 = vector.load %arg7[%c0, %c0_0] : memref<32x4xf32, #tpu.memory_space<vmem>>, vector<32x1xf32>
    %c0_1 = arith.constant 0 : index
    %c1 = arith.constant 1 : index
    %1 = vector.load %arg7[%c0_1, %c1] : memref<32x4xf32, #tpu.memory_space<vmem>>, vector<32x1xf32>
    %c0_2 = arith.constant 0 : index
    %c2 = arith.constant 2 : index
    %2 = vector.load %arg7[%c0_2, %c2] : memref<32x4xf32, #tpu.memory_space<vmem>>, vector<32x1xf32>
    %c0_3 = arith.constant 0 : index
    %c3 = arith.constant 3 : index
    %3 = vector.load %arg7[%c0_3, %c3] : memref<32x4xf32, #tpu.memory_space<vmem>>, vector<1x1xf32>
    %c0_4 = arith.constant 0 : index
    %c0_5 = arith.constant 0 : index
    %c0_6 = arith.constant 0 : index
    %4 = vector.load %arg1[%c0_4, %c0_5, %c0_6] : memref<1x32x4xf32, #tpu.memory_space<vmem>>, vector<1x32x4xf32>
    %5 = vector.shape_cast %4 : vector<1x32x4xf32> to vector<32x4xf32>
    %c0_7 = arith.constant 0 : index
    %c0_8 = arith.constant 0 : index
    %6 = vector.load %arg2[%c0_7, %c0_8] : memref<4x256xf32, #tpu.memory_space<vmem>>, vector<4x256xf32>
    %cst = arith.constant dense<0.000000e+00> : vector<32x256xf32>
    %7 = tpu.matmul %5, %6, %cst {dimension_numbers = #tpu.dot_dimension_numbers<[1], [0], [0], [1], [0, 0, 1, 1], [], []>} : vector<32x4xf32>, vector<4x256xf32>, vector<32x256xf32> -> vector<32x256xf32>
    %c0_9 = arith.constant 0 : index
    %c0_10 = arith.constant 0 : index
    %8 = vector.load %arg3[%c0_9, %c0_10] : memref<9x256xf32, #tpu.memory_space<vmem>>, vector<1x256xf32>
    %9 = vector.broadcast %8 : vector<1x256xf32> to vector<32x256xf32>
    %10 = arith.mulf %9, %7 : vector<32x256xf32>
    %c0_11 = arith.constant 0 : index
    %c0_12 = arith.constant 0 : index
    %11 = vector.load %arg10[%c0_11, %c0_12] : memref<288x256xf32, #tpu.memory_space<vmem>>, vector<32x256xf32>
    tpu.vector_store %arg10[%c0_11, %c0_12], %10 {strides = array<i32>} : memref<288x256xf32, #tpu.memory_space<vmem>>, vector<32x256xf32>,
    %c1_13 = arith.constant 1 : index
    %c0_14 = arith.constant 0 : index
    %12 = vector.load %arg3[%c1_13, %c0_14] : memref<9x256xf32, #tpu.memory_space<vmem>>, vector<1x256xf32>
    %13 = vector.broadcast %12 : vector<1x256xf32> to vector<32x256xf32>
    %14 = arith.mulf %13, %7 : vector<32x256xf32>
    %c32 = arith.constant 32 : index
    %c0_15 = arith.constant 0 : index
    %15 = vector.load %arg10[%c32, %c0_15] : memref<288x256xf32, #tpu.memory_space<vmem>>, vector<32x256xf32>
    tpu.vector_store %arg10[%c32, %c0_15], %14 {strides = array<i32>} : memref<288x256xf32, #tpu.memory_space<vmem>>, vector<32x256xf32>,
    %c2_16 = arith.constant 2 : index
    %c0_17 = arith.constant 0 : index
    %16 = vector.load %arg3[%c2_16, %c0_17] : memref<9x256xf32, #tpu.memory_space<vmem>>, vector<1x256xf32>
    %17 = vector.broadcast %16 : vector<1x256xf32> to vector<32x256xf32>
    %18 = arith.mulf %17, %7 : vector<32x256xf32>
    %c64 = arith.constant 64 : index
    %c0_18 = arith.constant 0 : index
    %19 = vector.load %arg10[%c64, %c0_18] : memref<288x256xf32, #tpu.memory_space<vmem>>, vector<32x256xf32>
    tpu.vector_store %arg10[%c64, %c0_18], %18 {strides = array<i32>} : memref<288x256xf32, #tpu.memory_space<vmem>>, vector<32x256xf32>,
    %c3_19 = arith.constant 3 : index
    %c0_20 = arith.constant 0 : index
    %20 = vector.load %arg3[%c3_19, %c0_20] : memref<9x256xf32, #tpu.memory_space<vmem>>, vector<1x256xf32>
    %21 = vector.broadcast %20 : vector<1x256xf32> to vector<32x256xf32>
    %22 = arith.mulf %21, %7 : vector<32x256xf32>
    %c96 = arith.constant 96 : index
    %c0_21 = arith.constant 0 : index
    %23 = vector.load %arg10[%c96, %c0_21] : memref<288x256xf32, #tpu.memory_space<vmem>>, vector<32x256xf32>
    tpu.vector_store %arg10[%c96, %c0_21], %22 {strides = array<i32>} : memref<288x256xf32, #tpu.memory_space<vmem>>, vector<32x256xf32>,
    %c4 = arith.constant 4 : index
    %c0_22 = arith.constant 0 : index
    %24 = vector.load %arg3[%c4, %c0_22] : memref<9x256xf32, #tpu.memory_space<vmem>>, vector<1x256xf32>
    %25 = vector.broadcast %24 : vector<1x256xf32> to vector<32x256xf32>
    %26 = arith.mulf %25, %7 : vector<32x256xf32>
    %c128 = arith.constant 128 : index
    %c0_23 = arith.constant 0 : index
    %27 = vector.load %arg10[%c128, %c0_23] : memref<288x256xf32, #tpu.memory_space<vmem>>, vector<32x256xf32>
    tpu.vector_store %arg10[%c128, %c0_23], %26 {strides = array<i32>} : memref<288x256xf32, #tpu.memory_space<vmem>>, vector<32x256xf32>,
    %c5 = arith.constant 5 : index
    %c0_24 = arith.constant 0 : index
    %28 = vector.load %arg3[%c5, %c0_24] : memref<9x256xf32, #tpu.memory_space<vmem>>, vector<1x256xf32>
    %29 = vector.broadcast %28 : vector<1x256xf32> to vector<32x256xf32>
    %30 = arith.mulf %29, %7 : vector<32x256xf32>
    %c160 = arith.constant 160 : index
    %c0_25 = arith.constant 0 : index
    %31 = vector.load %arg10[%c160, %c0_25] : memref<288x256xf32, #tpu.memory_space<vmem>>, vector<32x256xf32>
    tpu.vector_store %arg10[%c160, %c0_25], %30 {strides = array<i32>} : memref<288x256xf32, #tpu.memory_space<vmem>>, vector<32x256xf32>,
    %c6 = arith.constant 6 : index
    %c0_26 = arith.constant 0 : index
    %32 = vector.load %arg3[%c6, %c0_26] : memref<9x256xf32, #tpu.memory_space<vmem>>, vector<1x256xf32>
    %33 = vector.broadcast %32 : vector<1x256xf32> to vector<32x256xf32>
    %34 = arith.mulf %33, %7 : vector<32x256xf32>
    %c192 = arith.constant 192 : index
    %c0_27 = arith.constant 0 : index
    %35 = vector.load %arg10[%c192, %c0_27] : memref<288x256xf32, #tpu.memory_space<vmem>>, vector<32x256xf32>
    tpu.vector_store %arg10[%c192, %c0_27], %34 {strides = array<i32>} : memref<288x256xf32, #tpu.memory_space<vmem>>, vector<32x256xf32>,
    %c7 = arith.constant 7 : index
    %c0_28 = arith.constant 0 : index
    %36 = vector.load %arg3[%c7, %c0_28] : memref<9x256xf32, #tpu.memory_space<vmem>>, vector<1x256xf32>
    %37 = vector.broadcast %36 : vector<1x256xf32> to vector<32x256xf32>
    %38 = arith.mulf %37, %7 : vector<32x256xf32>
    %c224 = arith.constant 224 : index
    %c0_29 = arith.constant 0 : index
    %39 = vector.load %arg10[%c224, %c0_29] : memref<288x256xf32, #tpu.memory_space<vmem>>, vector<32x256xf32>
    tpu.vector_store %arg10[%c224, %c0_29], %38 {strides = array<i32>} : memref<288x256xf32, #tpu.memory_space<vmem>>, vector<32x256xf32>,
    %c8 = arith.constant 8 : index
    %c0_30 = arith.constant 0 : index
    %40 = vector.load %arg3[%c8, %c0_30] : memref<9x256xf32, #tpu.memory_space<vmem>>, vector<1x256xf32>
    %41 = vector.broadcast %40 : vector<1x256xf32> to vector<32x256xf32>
    %42 = arith.mulf %41, %7 : vector<32x256xf32>
    %c256 = arith.constant 256 : index
    %c0_31 = arith.constant 0 : index
    %43 = vector.load %arg10[%c256, %c0_31] : memref<288x256xf32, #tpu.memory_space<vmem>>, vector<32x256xf32>
    tpu.vector_store %arg10[%c256, %c0_31], %42 {strides = array<i32>} : memref<288x256xf32, #tpu.memory_space<vmem>>, vector<32x256xf32>,
    %c0_32 = arith.constant 0 : index
    %c0_33 = arith.constant 0 : index
    %44 = vector.load %arg5[%c0_32, %c0_33] : memref<32x288xf32, #tpu.memory_space<vmem>>, vector<32x288xf32>
    %c0_34 = arith.constant 0 : index
    %c0_35 = arith.constant 0 : index
    %45 = vector.load %arg10[%c0_34, %c0_35] : memref<288x256xf32, #tpu.memory_space<vmem>>, vector<288x256xf32>
    %cst_36 = arith.constant dense<0.000000e+00> : vector<32x256xf32>
    %46 = tpu.matmul %44, %45, %cst_36 {dimension_numbers = #tpu.dot_dimension_numbers<[1], [0], [0], [1], [0, 0, 1, 1], [], []>} : vector<32x288xf32>, vector<288x256xf32>, vector<32x256xf32> -> vector<32x256xf32>
    %47 = vector.broadcast %0 : vector<32x1xf32> to vector<32x256xf32>
    %48 = arith.addf %46, %47 : vector<32x256xf32>
    %c0_37 = arith.constant 0 : index
    %c0_38 = arith.constant 0 : index
    %49 = vector.load %arg4[%c0_37, %c0_38] : memref<32x256xf32, #tpu.memory_space<vmem>>, vector<32x256xf32>
    %50 = arith.addf %48, %49 : vector<32x256xf32>
    %cst_39 = arith.constant 0.000000e+00 : f32
    %51 = vector.broadcast %cst_39 : f32 to vector<32x256xf32>
    %52 = arith.maximumf %50, %51 : vector<32x256xf32>
    %c9_i32 = arith.constant 9 : i32
    %53 = tpu.dynamic_rotate %52 by %c9_i32 dim 1 : vector<32x256xf32>, i32 -> vector<32x256xf32>
    %c0_40 = arith.constant 0 : index
    %c0_41 = arith.constant 0 : index
    %54 = vector.load %arg3[%c0_40, %c0_41] : memref<9x256xf32, #tpu.memory_space<vmem>>, vector<1x256xf32>
    %55 = vector.broadcast %54 : vector<1x256xf32> to vector<32x256xf32>
    %56 = arith.mulf %55, %53 : vector<32x256xf32>
    %c0_42 = arith.constant 0 : index
    %c0_43 = arith.constant 0 : index
    %57 = vector.load %arg10[%c0_42, %c0_43] : memref<288x256xf32, #tpu.memory_space<vmem>>, vector<32x256xf32>
    tpu.vector_store %arg10[%c0_42, %c0_43], %56 {strides = array<i32>} : memref<288x256xf32, #tpu.memory_space<vmem>>, vector<32x256xf32>,
    %c8_i32 = arith.constant 8 : i32
    %58 = tpu.dynamic_rotate %52 by %c8_i32 dim 1 : vector<32x256xf32>, i32 -> vector<32x256xf32>
    %c1_44 = arith.constant 1 : index
    %c0_45 = arith.constant 0 : index
    %59 = vector.load %arg3[%c1_44, %c0_45] : memref<9x256xf32, #tpu.memory_space<vmem>>, vector<1x256xf32>
    %60 = vector.broadcast %59 : vector<1x256xf32> to vector<32x256xf32>
    %61 = arith.mulf %60, %58 : vector<32x256xf32>
    %c32_46 = arith.constant 32 : index
    %c0_47 = arith.constant 0 : index
    %62 = vector.load %arg10[%c32_46, %c0_47] : memref<288x256xf32, #tpu.memory_space<vmem>>, vector<32x256xf32>
    tpu.vector_store %arg10[%c32_46, %c0_47], %61 {strides = array<i32>} : memref<288x256xf32, #tpu.memory_space<vmem>>, vector<32x256xf32>,
    %c7_i32 = arith.constant 7 : i32
    %63 = tpu.dynamic_rotate %52 by %c7_i32 dim 1 : vector<32x256xf32>, i32 -> vector<32x256xf32>
    %c2_48 = arith.constant 2 : index
    %c0_49 = arith.constant 0 : index
    %64 = vector.load %arg3[%c2_48, %c0_49] : memref<9x256xf32, #tpu.memory_space<vmem>>, vector<1x256xf32>
    %65 = vector.broadcast %64 : vector<1x256xf32> to vector<32x256xf32>
    %66 = arith.mulf %65, %63 : vector<32x256xf32>
    %c64_50 = arith.constant 64 : index
    %c0_51 = arith.constant 0 : index
    %67 = vector.load %arg10[%c64_50, %c0_51] : memref<288x256xf32, #tpu.memory_space<vmem>>, vector<32x256xf32>
    tpu.vector_store %arg10[%c64_50, %c0_51], %66 {strides = array<i32>} : memref<288x256xf32, #tpu.memory_space<vmem>>, vector<32x256xf32>,
    %c1_i32 = arith.constant 1 : i32
    %68 = tpu.dynamic_rotate %52 by %c1_i32 dim 1 : vector<32x256xf32>, i32 -> vector<32x256xf32>
    %c3_52 = arith.constant 3 : index
    %c0_53 = arith.constant 0 : index
    %69 = vector.load %arg3[%c3_52, %c0_53] : memref<9x256xf32, #tpu.memory_space<vmem>>, vector<1x256xf32>
    %70 = vector.broadcast %69 : vector<1x256xf32> to vector<32x256xf32>
    %71 = arith.mulf %70, %68 : vector<32x256xf32>
    %c96_54 = arith.constant 96 : index
    %c0_55 = arith.constant 0 : index
    %72 = vector.load %arg10[%c96_54, %c0_55] : memref<288x256xf32, #tpu.memory_space<vmem>>, vector<32x256xf32>
    tpu.vector_store %arg10[%c96_54, %c0_55], %71 {strides = array<i32>} : memref<288x256xf32, #tpu.memory_space<vmem>>, vector<32x256xf32>,
    %c128_56 = arith.constant 128 : index
    %c0_57 = arith.constant 0 : index
    %73 = vector.load %arg10[%c128_56, %c0_57] : memref<288x256xf32, #tpu.memory_space<vmem>>, vector<32x256xf32>
    tpu.vector_store %arg10[%c128_56, %c0_57], %52 {strides = array<i32>} : memref<288x256xf32, #tpu.memory_space<vmem>>, vector<32x256xf32>,
    %c255_i32 = arith.constant 255 : i32
    %74 = tpu.dynamic_rotate %52 by %c255_i32 dim 1 : vector<32x256xf32>, i32 -> vector<32x256xf32>
    %c5_58 = arith.constant 5 : index
    %c0_59 = arith.constant 0 : index
    %75 = vector.load %arg3[%c5_58, %c0_59] : memref<9x256xf32, #tpu.memory_space<vmem>>, vector<1x256xf32>
    %76 = vector.broadcast %75 : vector<1x256xf32> to vector<32x256xf32>
    %77 = arith.mulf %76, %74 : vector<32x256xf32>
    %c160_60 = arith.constant 160 : index
    %c0_61 = arith.constant 0 : index
    %78 = vector.load %arg10[%c160_60, %c0_61] : memref<288x256xf32, #tpu.memory_space<vmem>>, vector<32x256xf32>
    tpu.vector_store %arg10[%c160_60, %c0_61], %77 {strides = array<i32>} : memref<288x256xf32, #tpu.memory_space<vmem>>, vector<32x256xf32>,
    %c249_i32 = arith.constant 249 : i32
    %79 = tpu.dynamic_rotate %52 by %c249_i32 dim 1 : vector<32x256xf32>, i32 -> vector<32x256xf32>
    %c6_62 = arith.constant 6 : index
    %c0_63 = arith.constant 0 : index
    %80 = vector.load %arg3[%c6_62, %c0_63] : memref<9x256xf32, #tpu.memory_space<vmem>>, vector<1x256xf32>
    %81 = vector.broadcast %80 : vector<1x256xf32> to vector<32x256xf32>
    %82 = arith.mulf %81, %79 : vector<32x256xf32>
    %c192_64 = arith.constant 192 : index
    %c0_65 = arith.constant 0 : index
    %83 = vector.load %arg10[%c192_64, %c0_65] : memref<288x256xf32, #tpu.memory_space<vmem>>, vector<32x256xf32>
    tpu.vector_store %arg10[%c192_64, %c0_65], %82 {strides = array<i32>} : memref<288x256xf32, #tpu.memory_space<vmem>>, vector<32x256xf32>,
    %c248_i32 = arith.constant 248 : i32
    %84 = tpu.dynamic_rotate %52 by %c248_i32 dim 1 : vector<32x256xf32>, i32 -> vector<32x256xf32>
    %c7_66 = arith.constant 7 : index
    %c0_67 = arith.constant 0 : index
    %85 = vector.load %arg3[%c7_66, %c0_67] : memref<9x256xf32, #tpu.memory_space<vmem>>, vector<1x256xf32>
    %86 = vector.broadcast %85 : vector<1x256xf32> to vector<32x256xf32>
    %87 = arith.mulf %86, %84 : vector<32x256xf32>
    %c224_68 = arith.constant 224 : index
    %c0_69 = arith.constant 0 : index
    %88 = vector.load %arg10[%c224_68, %c0_69] : memref<288x256xf32, #tpu.memory_space<vmem>>, vector<32x256xf32>
    tpu.vector_store %arg10[%c224_68, %c0_69], %87 {strides = array<i32>} : memref<288x256xf32, #tpu.memory_space<vmem>>, vector<32x256xf32>,
    %c247_i32 = arith.constant 247 : i32
    %89 = tpu.dynamic_rotate %52 by %c247_i32 dim 1 : vector<32x256xf32>, i32 -> vector<32x256xf32>
    %c8_70 = arith.constant 8 : index
    %c0_71 = arith.constant 0 : index
    %90 = vector.load %arg3[%c8_70, %c0_71] : memref<9x256xf32, #tpu.memory_space<vmem>>, vector<1x256xf32>
    %91 = vector.broadcast %90 : vector<1x256xf32> to vector<32x256xf32>
    %92 = arith.mulf %91, %89 : vector<32x256xf32>
    %c256_72 = arith.constant 256 : index
    %c0_73 = arith.constant 0 : index
    %93 = vector.load %arg10[%c256_72, %c0_73] : memref<288x256xf32, #tpu.memory_space<vmem>>, vector<32x256xf32>
    tpu.vector_store %arg10[%c256_72, %c0_73], %92 {strides = array<i32>} : memref<288x256xf32, #tpu.memory_space<vmem>>, vector<32x256xf32>,
    %c0_74 = arith.constant 0 : index
    %c0_75 = arith.constant 0 : index
    %94 = vector.load %arg6[%c0_74, %c0_75] : memref<32x288xf32, #tpu.memory_space<vmem>>, vector<32x288xf32>
    %c0_76 = arith.constant 0 : index
    %c0_77 = arith.constant 0 : index
    %95 = vector.load %arg10[%c0_76, %c0_77] : memref<288x256xf32, #tpu.memory_space<vmem>>, vector<288x256xf32>
    %cst_78 = arith.constant dense<0.000000e+00> : vector<32x256xf32>
    %96 = tpu.matmul %94, %95, %cst_78 {dimension_numbers = #tpu.dot_dimension_numbers<[1], [0], [0], [1], [0, 0, 1, 1], [], []>} : vector<32x288xf32>, vector<288x256xf32>, vector<32x256xf32> -> vector<32x256xf32>
    %97 = vector.broadcast %1 : vector<32x1xf32> to vector<32x256xf32>
    %98 = arith.addf %96, %97 : vector<32x256xf32>
    %cst_79 = arith.constant 0.000000e+00 : f32
    %99 = vector.broadcast %cst_79 : f32 to vector<32x256xf32>
    %100 = arith.maximumf %98, %99 : vector<32x256xf32>
    %c0_80 = arith.constant 0 : index
    %c0_81 = arith.constant 0 : index
    %101 = vector.load %arg8[%c0_80, %c0_81] : memref<32x256xf32, #tpu.memory_space<vmem>>, vector<32x256xf32>
    tpu.vector_store %arg8[%c0_80, %c0_81], %100 {strides = array<i32>} : memref<32x256xf32, #tpu.memory_space<vmem>>, vector<32x256xf32>,
    %102 = vector.broadcast %2 : vector<32x1xf32> to vector<32x256xf32>
    %103 = arith.mulf %100, %102 : vector<32x256xf32>
    %cst_82 = arith.constant dense<0.000000e+00> : vector<256xf32>
    %104 = vector.multi_reduction <add>, %103, %cst_82 [0] : vector<32x256xf32> to vector<256xf32>
    %105 = vector.shape_cast %104 : vector<256xf32> to vector<1x256xf32>
    %106 = vector.broadcast %3 : vector<1x1xf32> to vector<1x256xf32>
    %107 = arith.addf %105, %106 : vector<1x256xf32>
    %c0_83 = arith.constant 0 : index
    %c0_84 = arith.constant 0 : index
    %108 = vector.load %arg9[%c0_83, %c0_84] : memref<1x256xf32, #tpu.memory_space<vmem>>, vector<1x256xf32>
    tpu.vector_store %arg9[%c0_83, %c0_84], %107 {strides = array<i32>} : memref<1x256xf32, #tpu.memory_space<vmem>>, vector<1x256xf32>,
    return
  }
  func.func @transform_0(%arg0: i32) -> (i32, i32, i32) {
    %c0_i32 = arith.constant 0 : i32
    %c0_i32_0 = arith.constant 0 : i32
    %c0_i32_1 = arith.constant 0 : i32
    return %arg0, %c0_i32, %c0_i32_0 : i32, i32, i32
  }
  func.func @transform_1(%arg0: i32) -> (i32, i32) {
    %c0_i32 = arith.constant 0 : i32
    %c0_i32_0 = arith.constant 0 : i32
    %c0_i32_1 = arith.constant 0 : i32
    return %c0_i32, %c0_i32_0 : i32, i32
  }
  func.func @transform_2(%arg0: i32) -> (i32, i32) {
    %c0_i32 = arith.constant 0 : i32
    %c0_i32_0 = arith.constant 0 : i32
    %c0_i32_1 = arith.constant 0 : i32
    return %c0_i32, %c0_i32_0 : i32, i32
  }
  func.func @transform_3(%arg0: i32) -> (i32, i32) {
    %c0_i32 = arith.constant 0 : i32
    %c0_i32_0 = arith.constant 0 : i32
    %c0_i32_1 = arith.constant 0 : i32
    return %c0_i32, %c0_i32_0 : i32, i32
  }
  func.func @transform_4(%arg0: i32) -> (i32, i32) {
    %c0_i32 = arith.constant 0 : i32
    %c0_i32_0 = arith.constant 0 : i32
    %c0_i32_1 = arith.constant 0 : i32
    return %c0_i32, %c0_i32_0 : i32, i32
  }
  func.func @transform_5(%arg0: i32) -> (i32, i32) {
    %c0_i32 = arith.constant 0 : i32
    %c0_i32_0 = arith.constant 0 : i32
    %c0_i32_1 = arith.constant 0 : i32
    return %c0_i32, %c0_i32_0 : i32, i32
  }
  func.func @transform_6(%arg0: i32) -> (i32, i32) {
    %c0_i32 = arith.constant 0 : i32
    %c0_i32_0 = arith.constant 0 : i32
    %c0_i32_1 = arith.constant 0 : i32
    return %c0_i32, %c0_i32_0 : i32, i32
  }
  func.func @transform_7(%arg0: i32) -> (i32, i32) {
    %c0_i32 = arith.constant 0 : i32
    %c0_i32_0 = arith.constant 0 : i32
    return %c0_i32, %arg0 : i32, i32
  }
  func.func @transform_8(%arg0: i32) -> (i32, i32) {
    %c0_i32 = arith.constant 0 : i32
    %c0_i32_0 = arith.constant 0 : i32
    return %c0_i32, %arg0 : i32, i32
  }
}

</mosaic_0001>

<llo_original>
// kernel: tpu_custom_call.1
$region0: #{tpu_custom_call.1}
  #allocation0 [shape = 'u32[]', space=smem, size = 0x4, offset = 0x4, fixed_abs, tag = 'smem constant byte address 0x4 - core index']
  #allocation1 [shape = 'u32[144,128]{1,0:T(1,128)}', space=vmem, size = 0x12000, scoped, tag = 'internal scratch']
  #allocation2 [shape = 'f32[288,256]{1,0:T(8,128)}', space=vmem, size = 0x48000, scoped, tag = 'scratch operand']
  %s0 = inlined_call_operand.vmem [shape: f32[2,32,4], index: 0, kind: input, shape index: {}]
  %s1 = inlined_call_operand.vmem [shape: f32[4,256], index: 1, kind: input, shape index: {}]
  %s2 = inlined_call_operand.hbm [shape: f32[9,256], index: 2, kind: input, shape index: {}]
  %s3 = inlined_call_operand.hbm [shape: f32[32,256], index: 3, kind: input, shape index: {}]
  %s4 = inlined_call_operand.vmem [shape: f32[32,288], index: 4, kind: input, shape index: {}]
  %s5 = inlined_call_operand.hbm [shape: f32[32,288], index: 5, kind: input, shape index: {}]
  %s6 = inlined_call_operand.vmem [shape: f32[32,4], index: 6, kind: input, shape index: {}]
  %s7 = inlined_call_operand.hbm [shape: f32[32,512], index: 7, kind: output, shape index: {0}]
  %s8 = inlined_call_operand.hbm [shape: f32[1,512], index: 8, kind: output, shape index: {1}]
  %9 = xla_tuple %s7, %s8
  %s10 = sld [smem:[#allocation0]]
  $region81: #{tpu_custom_call.1} parent=0
    _
  %s12 = ssub.s32 1, %s10
  %s13 = scalar_select 0, %s12, %s10
  $region1: #{tpu_custom_call.1} parent=0
    #allocation3 [shape = 'u8[16384]{0}', space=vmem, size = 0x4000, scoped, tag = 'input window, operand 2, single buffered']
    #allocation4 [shape = 's32[2]{0}', space=sflag, size = 0x8, scoped, tag = 'scoped memory for tpu_custom_call.1']
    #allocation5 [shape = 's32[2]{0}', space=sflag, size = 0x8, scoped, tag = 'scoped memory for tpu_custom_call.1']
    #allocation6 [shape = 'u8[32768]{0}', space=vmem, size = 0x8000, scoped, tag = 'input window, operand 3, single buffered']
    #allocation7 [shape = 's32[1]{0}', space=sflag, size = 0x4, scoped, tag = 'scoped memory for tpu_custom_call.1']
    #allocation8 [shape = 'u8[49152]{0}', space=vmem, size = 0xc000, scoped, tag = 'input window, operand 5, single buffered']
    #allocation9 [shape = 'u8[65536]{0}', space=vmem, size = 0x10000, scoped, tag = 'output window, operand 0']
    #allocation10 [shape = 'u8[2048]{0}', space=vmem, size = 0x800, scoped, tag = 'output window, operand 1']
    #allocation11 [shape = 's32[2]{0}', space=sflag, size = 0x8, scoped, tag = 'scoped memory for tpu_custom_call.1']
    %14 = vsyncpa [#allocation4], 0
    %15 = vsyncpa [#allocation7], 0
    %16 = vsyncpa [#allocation5], 0
    %s17 = scalar_lea.sflag [#allocation5], 1
    %18 = vsyncpa %s17, 0
    %19 = vsyncpa [#allocation11], 0
    %s20 = scalar_lea.sflag [#allocation11], 1
    %21 = vsyncpa %s20, 0
    loop: start=0, step=1, limit=4
    $region2: #{tpu_custom_call.1} parent=1 // loop_pre_header
      _
    $region3: #{tpu_custom_call.1} parent=1 // loop_header
      %s23 = sphi 0, %s27
      %p24 = scmp.ge.s32.totalorder %s23, 4
      %s33 = sphi 0, %s35
      %s36 = sphi 0, %s33
      %s37 = sphi 0, %s36
      %s53 = sphi 0, %s37
      %s57 = sphi 0, %s57
      %s59 = sphi 0, %s57
      %s60 = sphi 0, %s59
      %s74 = sphi 0, %s60
      %s78 = sphi 0, %s78
      %s80 = sphi 0, %s78
      %s81 = sphi 0, %s80
      %s95 = sphi 0, %s81
      %s99 = sphi 0, %s99
      %s101 = sphi 0, %s99
      %s102 = sphi 0, %s101
      %s116 = sphi 0, %s102
      %s120 = sphi 0, %s120
      %s122 = sphi 0, %s120
      %s123 = sphi 0, %s122
      %s137 = sphi 0, %s123
      %s141 = sphi 0, %s141
      %s143 = sphi 0, %s141
      %s144 = sphi 0, %s143
      %s158 = sphi 0, %s144
      %s162 = sphi 0, %s162
      %s164 = sphi 0, %s162
      %s165 = sphi 0, %s164
      %s179 = sphi 0, %s165
      %s185 = sphi 0, %s187
      %s188 = sphi 0, %s185
      %s189 = sphi 0, %s188
      %s205 = sphi 0, %s189
      %s211 = sphi 0, %s213
      %s214 = sphi 0, %s211
      %s215 = sphi 0, %s214
      %s231 = sphi 0, %s215
    $region4: #{tpu_custom_call.1} parent=1 // loop_header_branch
      %26 = sbr.rel (%p24) target = $region8
    $region5: #{tpu_custom_call.1} parent=1 // loop_body
      %s28 = ssub.s32 %s23, 1
      %s29 = ssub.s32 %s23, 2
      %s30 = sadd.s32 %s23, 1
      %s31 = ssub.s32 %s23, %s30
      %p32 = scmp.eq.s32.totalorder %s31, 0
      %s34 = sadd.s32 %s33, 1
      %s35 = scalar_select %p32, %s33, %s34
      %p38 = pneg %p32
      %p39 = scmp.eq.s32.totalorder %s23, 1
      %p40 = por %p38, %p39
      %p41 = scmp.ne.s32.totalorder %s33, %s36
      %p42 = scmp.eq.s32.totalorder %s23, 0
      %p43 = por %p41, %p42
      %p44 = scmp.ne.s32.totalorder %s33, %s36
      %p45 = scmp.eq.s32.totalorder %s28, 1
      %p46 = por %p44, %p45
      %p47 = scmp.ne.s32.totalorder %s36, %s37
      %p48 = scmp.eq.s32.totalorder %s28, 0
      %p49 = por %p47, %p48
      %p50 = scmp.ne.s32.totalorder %s36, %s37
      %p51 = scmp.eq.s32.totalorder %s29, 1
      %p52 = por %p50, %p51
      %p54 = scmp.ne.s32.totalorder %s37, %s53
      %p55 = scmp.eq.s32.totalorder %s29, 0
      %p56 = por %p54, %p55
      %s58 = sadd.s32 %s57, 1
      %p61 = scmp.eq.s32.totalorder %s23, 1
      %p62 = scmp.ne.s32.totalorder %s57, %s59
      %p63 = scmp.eq.s32.totalorder %s23, 0
      %p64 = por %p62, %p63
      %p65 = scmp.ne.s32.totalorder %s57, %s59
      %p66 = scmp.eq.s32.totalorder %s28, 1
      %p67 = por %p65, %p66
      %p68 = scmp.ne.s32.totalorder %s59, %s60
      %p69 = scmp.eq.s32.totalorder %s28, 0
      %p70 = por %p68, %p69
      %p71 = scmp.ne.s32.totalorder %s59, %s60
      %p72 = scmp.eq.s32.totalorder %s29, 1
      %p73 = por %p71, %p72
      %p75 = scmp.ne.s32.totalorder %s60, %s74
      %p76 = scmp.eq.s32.totalorder %s29, 0
      %p77 = por %p75, %p76
      %s79 = sadd.s32 %s78, 1
      %p82 = scmp.eq.s32.totalorder %s23, 1
      %p83 = scmp.ne.s32.totalorder %s78, %s80
      %p84 = scmp.eq.s32.totalorder %s23, 0
      %p85 = por %p83, %p84
      %p86 = scmp.ne.s32.totalorder %s78, %s80
      %p87 = scmp.eq.s32.totalorder %s28, 1
      %p88 = por %p86, %p87
      %p89 = scmp.ne.s32.totalorder %s80, %s81
      %p90 = scmp.eq.s32.totalorder %s28, 0
      %p91 = por %p89, %p90
      %p92 = scmp.ne.s32.totalorder %s80, %s81
      %p93 = scmp.eq.s32.totalorder %s29, 1
      %p94 = por %p92, %p93
      %p96 = scmp.ne.s32.totalorder %s81, %s95
      %p97 = scmp.eq.s32.totalorder %s29, 0
      %p98 = por %p96, %p97
      %s100 = sadd.s32 %s99, 1
      %p103 = scmp.eq.s32.totalorder %s23, 1
      %p104 = scmp.ne.s32.totalorder %s99, %s101
      %p105 = scmp.eq.s32.totalorder %s23, 0
      %p106 = por %p104, %p105
      %p107 = scmp.ne.s32.totalorder %s99, %s101
      %p108 = scmp.eq.s32.totalorder %s28, 1
      %p109 = por %p107, %p108
      %p110 = scmp.ne.s32.totalorder %s101, %s102
      %p111 = scmp.eq.s32.totalorder %s28, 0
      %p112 = por %p110, %p111
      %p113 = scmp.ne.s32.totalorder %s101, %s102
      %p114 = scmp.eq.s32.totalorder %s29, 1
      %p115 = por %p113, %p114
      %p117 = scmp.ne.s32.totalorder %s102, %s116
      %p118 = scmp.eq.s32.totalorder %s29, 0
      %p119 = por %p117, %p118
      %s121 = sadd.s32 %s120, 1
      %p124 = scmp.eq.s32.totalorder %s23, 1
      %p125 = scmp.ne.s32.totalorder %s120, %s122
      %p126 = scmp.eq.s32.totalorder %s23, 0
      %p127 = por %p125, %p126
      %p128 = scmp.ne.s32.totalorder %s120, %s122
      %p129 = scmp.eq.s32.totalorder %s28, 1
      %p130 = por %p128, %p129
      %p131 = scmp.ne.s32.totalorder %s122, %s123
      %p132 = scmp.eq.s32.totalorder %s28, 0
      %p133 = por %p131, %p132
      %p134 = scmp.ne.s32.totalorder %s122, %s123
      %p135 = scmp.eq.s32.totalorder %s29, 1
      %p136 = por %p134, %p135
      %p138 = scmp.ne.s32.totalorder %s123, %s137
      %p139 = scmp.eq.s32.totalorder %s29, 0
      %p140 = por %p138, %p139
      %s142 = sadd.s32 %s141, 1
      %p145 = scmp.eq.s32.totalorder %s23, 1
      %p146 = scmp.ne.s32.totalorder %s141, %s143
      %p147 = scmp.eq.s32.totalorder %s23, 0
      %p148 = por %p146, %p147
      %p149 = scmp.ne.s32.totalorder %s141, %s143
      %p150 = scmp.eq.s32.totalorder %s28, 1
      %p151 = por %p149, %p150
      %p152 = scmp.ne.s32.totalorder %s143, %s144
      %p153 = scmp.eq.s32.totalorder %s28, 0
      %p154 = por %p152, %p153
      %p155 = scmp.ne.s32.totalorder %s143, %s144
      %p156 = scmp.eq.s32.totalorder %s29, 1
      %p157 = por %p155, %p156
      %p159 = scmp.ne.s32.totalorder %s144, %s158
      %p160 = scmp.eq.s32.totalorder %s29, 0
      %p161 = por %p159, %p160
      %s163 = sadd.s32 %s162, 1
      %p166 = scmp.eq.s32.totalorder %s23, 1
      %p167 = scmp.ne.s32.totalorder %s162, %s164
      %p168 = scmp.eq.s32.totalorder %s23, 0
      %p169 = por %p167, %p168
      %p170 = scmp.ne.s32.totalorder %s162, %s164
      %p171 = scmp.eq.s32.totalorder %s28, 1
      %p172 = por %p170, %p171
      %p173 = scmp.ne.s32.totalorder %s164, %s165
      %p174 = scmp.eq.s32.totalorder %s28, 0
      %p175 = por %p173, %p174
      %p176 = scmp.ne.s32.totalorder %s164, %s165
      %p177 = scmp.eq.s32.totalorder %s29, 1
      %p178 = por %p176, %p177
      %p180 = scmp.ne.s32.totalorder %s165, %s179
      %p181 = scmp.eq.s32.totalorder %s29, 0
      %p182 = por %p180, %p181
      %s183 = ssub.s32 %s23, %s30
      %p184 = scmp.eq.s32.totalorder %s183, 0
      %s186 = sadd.s32 %s185, 1
      %s187 = scalar_select %p184, %s185, %s186
      %p190 = pneg %p184
      %p191 = scmp.eq.s32.totalorder %s23, 1
      %p192 = por %p190, %p191
      %p193 = scmp.ne.s32.totalorder %s185, %s188
      %p194 = scmp.eq.s32.totalorder %s23, 0
      %p195 = por %p193, %p194
      %p196 = scmp.ne.s32.totalorder %s185, %s188
      %p197 = scmp.eq.s32.totalorder %s28, 1
      %p198 = por %p196, %p197
      %p199 = scmp.ne.s32.totalorder %s188, %s189
      %p200 = scmp.eq.s32.totalorder %s28, 0
      %p201 = por %p199, %p200
      %p202 = scmp.ne.s32.totalorder %s188, %s189
      %p203 = scmp.eq.s32.totalorder %s29, 1
      %p204 = por %p202, %p203
      %p206 = scmp.ne.s32.totalorder %s189, %s205
      %p207 = scmp.eq.s32.totalorder %s29, 0
      %p208 = por %p206, %p207
      %s209 = ssub.s32 %s23, %s30
      %p210 = scmp.eq.s32.totalorder %s209, 0
      %s212 = sadd.s32 %s211, 1
      %s213 = scalar_select %p210, %s211, %s212
      %p216 = pneg %p210
      %p217 = scmp.eq.s32.totalorder %s23, 1
      %p218 = por %p216, %p217
      %p219 = scmp.ne.s32.totalorder %s211, %s214
      %p220 = scmp.eq.s32.totalorder %s23, 0
      %p221 = por %p219, %p220
      %p222 = scmp.ne.s32.totalorder %s211, %s214
      %p223 = scmp.eq.s32.totalorder %s28, 1
      %p224 = por %p222, %p223
      %p225 = scmp.ne.s32.totalorder %s214, %s215
      %p226 = scmp.eq.s32.totalorder %s28, 0
      %p227 = por %p225, %p226
      %p228 = scmp.ne.s32.totalorder %s214, %s215
      %p229 = scmp.eq.s32.totalorder %s29, 1
      %p230 = por %p228, %p229
      %p232 = scmp.ne.s32.totalorder %s215, %s231
      %p233 = scmp.eq.s32.totalorder %s29, 0
      %p234 = por %p232, %p233
      %p235 = scmp.le.s32.totalorder 1, %s23
      %p236 = scmp.lt.s32.totalorder %s23, 3
      %p237 = pnand %p235, %p236
      %p238 = pneg %p237
      // Predicated region
      $region9: #{tpu_custom_call.1} parent=5 // pred_check
        _
      $region10: #{tpu_custom_call.1} parent=5 // pred_check_branch
        %240 = sbr.rel (%p237) target = $region12
      $region11: #{tpu_custom_call.1} parent=5 // pred_region
        %s241 = ssub.s32 %s23, 1
        // Predicated region
        $region13: #{tpu_custom_call.1} parent=11 // pred_check
          %p242 = pneg %p70
        $region14: #{tpu_custom_call.1} parent=11 // pred_check_branch
          %244 = sbr.rel (%p242) target = $region16
        $region15: #{tpu_custom_call.1} parent=11 // pred_region
          _
        $region16: #{tpu_custom_call.1} parent=11 // pred_fallthru
          _
        // Predicated region
        $region17: #{tpu_custom_call.1} parent=11 // pred_check
          %p245 = pneg %p91
        $region18: #{tpu_custom_call.1} parent=11 // pred_check_branch
          %247 = sbr.rel (%p245) target = $region20
        $region19: #{tpu_custom_call.1} parent=11 // pred_region
          %s249 = ssub.s32 512, 512
          %250 = vsyncadd [#allocation4], %s249
          %s251 = sshll.u32 [#allocation3], 4
          %s252 = int_to_ptr.vmem [resolvable:$true] %s251
          %257 = dma.hbm_to_vmem [thread:$0]  %s2, 512, %s252, [#allocation4], 256, 256, 16
        $region20: #{tpu_custom_call.1} parent=11 // pred_fallthru
          _
        // Predicated region
        $region21: #{tpu_custom_call.1} parent=11 // pred_check
          %p258 = pneg %p112
        $region22: #{tpu_custom_call.1} parent=11 // pred_check_branch
          %260 = sbr.rel (%p258) target = $region24
        $region23: #{tpu_custom_call.1} parent=11 // pred_region
          %s262 = ssub.s32 1024, 1024
          %263 = vsyncadd [#allocation7], %s262
          %s264 = sshll.u32 [#allocation6], 4
          %s265 = int_to_ptr.vmem [resolvable:$true] %s264
          %270 = dma.hbm_to_vmem [thread:$0]  %s3, 1024, %s265, [#allocation7], 256, 256, 16
        $region24: #{tpu_custom_call.1} parent=11 // pred_fallthru
          _
        // Predicated region
        $region25: #{tpu_custom_call.1} parent=11 // pred_check
          %p271 = pneg %p133
        $region26: #{tpu_custom_call.1} parent=11 // pred_check_branch
          %273 = sbr.rel (%p271) target = $region28
        $region27: #{tpu_custom_call.1} parent=11 // pred_region
          _
        $region28: #{tpu_custom_call.1} parent=11 // pred_fallthru
          _
        // Predicated region
        $region29: #{tpu_custom_call.1} parent=11 // pred_check
          %p274 = pneg %p154
        $region30: #{tpu_custom_call.1} parent=11 // pred_check_branch
          %276 = sbr.rel (%p274) target = $region32
        $region31: #{tpu_custom_call.1} parent=11 // pred_region
          %s278 = ssub.s32 1536, 1536
          %279 = vsyncadd [#allocation7], %s278
          %s280 = sshll.u32 [#allocation8], 4
          %s281 = int_to_ptr.vmem [resolvable:$true] %s280
          %286 = dma.hbm_to_vmem [thread:$0]  %s5, 1536, %s281, [#allocation7], 384, 384, 24
        $region32: #{tpu_custom_call.1} parent=11 // pred_fallthru
          _
        // Predicated region
        $region33: #{tpu_custom_call.1} parent=11 // pred_check
          %p287 = pneg %p175
        $region34: #{tpu_custom_call.1} parent=11 // pred_check_branch
          %289 = sbr.rel (%p287) target = $region36
        $region35: #{tpu_custom_call.1} parent=11 // pred_region
          _
        $region36: #{tpu_custom_call.1} parent=11 // pred_fallthru
          _
      $region12: #{tpu_custom_call.1} parent=5 // pred_fallthru
        _
      %p290 = scmp.lt.s32.totalorder %s23, 2
      // Predicated region
      $region37: #{tpu_custom_call.1} parent=5 // pred_check
        %p291 = pneg %p290
      $region38: #{tpu_custom_call.1} parent=5 // pred_check_branch
        %293 = sbr.rel (%p291) target = $region40
      $region39: #{tpu_custom_call.1} parent=5 // pred_region
        // Predicated region
        $region41: #{tpu_custom_call.1} parent=39 // pred_check
          %p294 = pneg %p43
        $region42: #{tpu_custom_call.1} parent=39 // pred_check_branch
          %296 = sbr.rel (%p294) target = $region44
        $region43: #{tpu_custom_call.1} parent=39 // pred_region
          %p297 = scmp.lt.s32.totalorder %s23, 1
          %s298 = scalar_select %p297, %s23, 1
          %s299 = smul.addr %s298, 4
          %s300 = smul.addr %s299, 8
          %s301 = scalar_lea.vmem %s0, %s300
        $region44: #{tpu_custom_call.1} parent=39 // pred_fallthru
          _
      $region40: #{tpu_custom_call.1} parent=5 // pred_fallthru
        _
      %p302 = scmp.le.s32.totalorder 1, %s23
      %p303 = scmp.lt.s32.totalorder %s23, 3
      %p304 = pnand %p302, %p303
      %p305 = pneg %p304
      // Predicated region
      $region45: #{tpu_custom_call.1} parent=5 // pred_check
        _
      $region46: #{tpu_custom_call.1} parent=5 // pred_check_branch
        %307 = sbr.rel (%p304) target = $region48
      $region47: #{tpu_custom_call.1} parent=5 // pred_region
        %s308 = ssub.s32 %s23, 1
        // Predicated region
        $region49: #{tpu_custom_call.1} parent=47 // pred_check
          %p309 = pneg %p91
        $region50: #{tpu_custom_call.1} parent=47 // pred_check_branch
          %311 = sbr.rel (%p309) target = $region52
        $region51: #{tpu_custom_call.1} parent=47 // pred_region
          %312 = dma.done [#allocation4], 512
        $region52: #{tpu_custom_call.1} parent=47 // pred_fallthru
          _
        // Predicated region
        $region53: #{tpu_custom_call.1} parent=47 // pred_check
          %p313 = pneg %p112
        $region54: #{tpu_custom_call.1} parent=47 // pred_check_branch
          %315 = sbr.rel (%p313) target = $region56
        $region55: #{tpu_custom_call.1} parent=47 // pred_region
          %316 = dma.done [#allocation7], 1024
        $region56: #{tpu_custom_call.1} parent=47 // pred_fallthru
          _
        // Predicated region
        $region57: #{tpu_custom_call.1} parent=47 // pred_check
          %p317 = pneg %p154
        $region58: #{tpu_custom_call.1} parent=47 // pred_check_branch
          %319 = sbr.rel (%p317) target = $region60
        $region59: #{tpu_custom_call.1} parent=47 // pred_region
          %320 = dma.done [#allocation7], 1536
        $region60: #{tpu_custom_call.1} parent=47 // pred_fallthru
          _
        %p321 = scmp.lt.s32.totalorder %s28, 1
        %s322 = scalar_select %p321, %s28, 1
        %s323 = smul.addr %s322, 4
        %s324 = smul.addr %s323, 8
        %s325 = scalar_lea.vmem %s0, %s324
        %p326 = pneg %p49
        %p327 = pneg %p46
        %p328 = pneg %p70
        %p329 = pneg %p67
        %p330 = pneg %p91
        %p331 = pneg %p88
        %p332 = pneg %p112
        %p333 = pneg %p109
        %p334 = pneg %p133
        %p335 = pneg %p130
        %p336 = pneg %p154
        %p337 = pneg %p151
        %p338 = pneg %p175
        %p339 = pneg %p172
        %p340 = pneg %p201
        %p341 = pneg %p198
        %s342 = sand.u32 %s188, 1
        %s343 = scalar_lea.sflag [#allocation5], %s342
        %s344 = sand.u32 %s188, 1
        %s345 = smul.addr %s344, 64
        %s346 = scalar_lea.vmem [#allocation9], %s345
        %p347 = pneg %p227
        %p348 = pneg %p224
        %s349 = sand.u32 %s214, 1
        %s350 = scalar_lea.sflag [#allocation11], %s349
        %s351 = sand.u32 %s214, 1
        %s352 = smul.addr %s351, 2
        %s353 = scalar_lea.vmem [#allocation10], %s352
        %p354 = scmp.lt.s32.totalorder %s28, 1
        %s355 = scalar_select %p354, %s28, 1
        %s356 = smul.addr %s355, 4
        %s357 = smul.addr %s356, 8
        %s358 = scalar_lea.vmem %s0, %s357
        %s359 = smul.u32 2, %s28
        %s360 = smul.u32 2, %s28
        %v361 = vld [vmem:[%s6] sm:$0xff]
        %v362 = vld [vmem:[%s6 + $0x8] sm:$0xff]
        %v363 = vld [vmem:[%s6 + $0x10] sm:$0xff]
        %v364 = vld [vmem:[%s6 + $0x18] sm:$0xff]
        %v365 = vld [vmem:[%s6] sm:$0x1]
        %v366 = vld [vmem:[%s358] sm:$0xff]
        %v367 = vld [vmem:[%s358 + $0x8] sm:$0xff]
        %v368 = vld [vmem:[%s358 + $0x10] sm:$0xff]
        %v369 = vld [vmem:[%s358 + $0x18] sm:$0xff]
        %v370 = vld [vmem:[%s1] sm:$0xff]
        %v372 = vcombine.high %v370, %v370
        %vm373 = vcmask 31744
        %v375 = vsel %vm373, %v366, 0
        %v378 = vsel %vm373, %v367, 0
        %v381 = vsel %vm373, %v368, 0
        %v384 = vsel %vm373, %v369, 0
        %vm386 = vcmask 1043456
        %v387 = vsel %vm386, %v370, 0
        %v389 = vsel %vm386, %v372, 0
        %391 = vmatprep.subr.mxu0 %v389
        %392 = vmatpush1.msra.mxu0 %v387
        %393 = vmatprep.subr.mxu0 0.0
        %394 = vmatpush1.msra.mxu0 0.0
        %395 = vmatprep.subr.mxu0 0.0
        %396 = vmatpush1.msra.mxu0 0.0
        %397 = vmatprep.subr.mxu0 0.0
        %398 = vmatpush1.msra.mxu0 0.0
        %399 = vmatprep.subr.mxu0 0.0
        %400 = vmatpush1.msra.mxu0 0.0
        %401 = vmatprep.subr.mxu0 0.0
        %402 = vmatpush1.msra.mxu0 0.0
        %403 = vmatprep.subr.mxu0 0.0
        %404 = vmatpush1.msra.mxu0 0.0
        %405 = vmatprep.subr.mxu0 0.0
        %406 = vmatpush1.msra.mxu0 0.0
        %407 = vmatprep.subr.mxu0 0.0
        %408 = vmatpush1.msra.mxu0 0.0
        %409 = vmatprep.subr.mxu0 0.0
        %410 = vmatpush1.msra.mxu0 0.0
        %411 = vmatprep.subr.mxu0 0.0
        %412 = vmatpush1.msra.mxu0 0.0
        %413 = vmatprep.subr.mxu0 0.0
        %414 = vmatpush1.msra.mxu0 0.0
        %415 = vmatprep.subr.mxu0 0.0
        %416 = vmatpush1.msra.mxu0 0.0
        %417 = vmatprep.subr.mxu0 0.0
        %418 = vmatpush1.msra.mxu0 0.0
        %419 = vmatprep.subr.mxu0 0.0
        %420 = vmatpush1.msra.mxu0 0.0
        %421 = vmatprep.subr.mxu0 0.0
        %422 = vmatpush1.msra.mxu0 0.0
        %423 = vmatprep.subr.mxu0 0.0
        %424 = vmatpush1.msra.mxu0 0.0
        %425 = vmatprep.subr.mxu0 0.0
        %426 = vmatpush1.msra.mxu0 0.0
        %427 = vmatprep.subr.mxu0 0.0
        %428 = vmatpush1.msra.mxu0 0.0
        %429 = vmatprep.subr.mxu0 0.0
        %430 = vmatpush1.msra.mxu0 0.0
        %431 = vmatprep.subr.mxu0 0.0
        %432 = vmatpush1.msra.mxu0 0.0
        %433 = vmatprep.subr.mxu0 0.0
        %434 = vmatpush1.msra.mxu0 0.0
        %435 = vmatprep.subr.mxu0 0.0
        %436 = vmatpush1.msra.mxu0 0.0
        %437 = vmatprep.subr.mxu0 0.0
        %438 = vmatpush1.msra.mxu0 0.0
        %439 = vmatprep.subr.mxu0 0.0
        %440 = vmatpush1.msra.mxu0 0.0
        %441 = vmatprep.subr.mxu0 0.0
        %442 = vmatpush1.msra.mxu0 0.0
        %443 = vmatprep.subr.mxu0 0.0
        %444 = vmatpush1.msra.mxu0 0.0
        %445 = vmatprep.subr.mxu0 0.0
        %446 = vmatpush1.msra.mxu0 0.0
        %447 = vmatprep.subr.mxu0 0.0
        %448 = vmatpush1.msra.mxu0 0.0
        %449 = vmatprep.subr.mxu0 0.0
        %450 = vmatpush1.msra.mxu0 0.0
        %451 = vmatprep.subr.mxu0 0.0
        %452 = vmatpush1.msra.mxu0 0.0
        %453 = vmatprep.subr.mxu0 0.0
        %454 = vmatpush1.msra.mxu0 0.0
        %455 = vmatprep.mubr.f32.mxu0 0.0
        %456 = vmatmul.mubr.f32.gmra.mrb[0].mxu0 %v375
        %v457 = vpop.f32.mrb[0].mxu0
        %v458 = vadd.f32 0.0, %v457
        %v459 = vpop.f32.mrb[0].mxu0
        %v460 = vadd.f32 0.0, %v459
        %461 = vmatprep.mubr.f32.mxu0 0.0
        %462 = vmatmul.mubr.f32.gmra.mrb[0].mxu0 %v378
        %v463 = vpop.f32.mrb[0].mxu0
        %v464 = vadd.f32 0.0, %v463
        %v465 = vpop.f32.mrb[0].mxu0
        %v466 = vadd.f32 0.0, %v465
        %467 = vmatprep.mubr.f32.mxu0 0.0
        %468 = vmatmul.mubr.f32.gmra.mrb[0].mxu0 %v381
        %v469 = vpop.f32.mrb[0].mxu0
        %v470 = vadd.f32 0.0, %v469
        %v471 = vpop.f32.mrb[0].mxu0
        %v472 = vadd.f32 0.0, %v471
        %473 = vmatprep.mubr.f32.mxu0 0.0
        %474 = vmatmul.mubr.f32.gmra.mrb[0].mxu0 %v384
        %v475 = vpop.f32.mrb[0].mxu0
        %v476 = vadd.f32 0.0, %v475
        %v477 = vpop.f32.mrb[0].mxu0
        %v478 = vadd.f32 0.0, %v477
        %479 = vdwg.mxu0
        %v480 = vld [vmem:[#allocation3] ss:$8 sm:$0x3]
        %v482 = vlaneseq
        %v483 = vshrl.u32 %v482, 7
        %v484 = vsub.s32 0, %v483
        %v485 = vrot.slane %v480, %v484
        %v486 = vlaneseq
        %v487 = vshrl.u32 %v486, 7
        %v488 = vsub.s32 1, %v487
        %v489 = vrot.slane %v480, %v488
        %v492 = vmul.f32 %v485, %v458
        %v493 = vmul.f32 %v489, %v460
        %v494 = vmul.f32 %v485, %v464
        %v495 = vmul.f32 %v489, %v466
        %v496 = vmul.f32 %v485, %v470
        %v497 = vmul.f32 %v489, %v472
        %v498 = vmul.f32 %v485, %v476
        %v499 = vmul.f32 %v489, %v478
        %500 = vst [vmem:[#allocation2] sm:$0xff] %v492
        %501 = vst [vmem:[#allocation2 + $0x8] sm:$0xff] %v493
        %502 = vst [vmem:[#allocation2 + $0x10] sm:$0xff] %v494
        %503 = vst [vmem:[#allocation2 + $0x18] sm:$0xff] %v495
        %504 = vst [vmem:[#allocation2 + $0x20] sm:$0xff] %v496
        %505 = vst [vmem:[#allocation2 + $0x28] sm:$0xff] %v497
        %506 = vst [vmem:[#allocation2 + $0x30] sm:$0xff] %v498
        %507 = vst [vmem:[#allocation2 + $0x38] sm:$0xff] %v499
        %s508 = scalar_lea.vmem [#allocation3], 1
        %v509 = vld [vmem:[%s508] ss:$8 sm:$0x3]
        %v511 = vlaneseq
        %v512 = vshrl.u32 %v511, 7
        %v513 = vsub.s32 0, %v512
        %v514 = vrot.slane %v509, %v513
        %v515 = vlaneseq
        %v516 = vshrl.u32 %v515, 7
        %v517 = vsub.s32 1, %v516
        %v518 = vrot.slane %v509, %v517
        %v521 = vmul.f32 %v514, %v458
        %v522 = vmul.f32 %v518, %v460
        %v523 = vmul.f32 %v514, %v464
        %v524 = vmul.f32 %v518, %v466
        %v525 = vmul.f32 %v514, %v470
        %v526 = vmul.f32 %v518, %v472
        %v527 = vmul.f32 %v514, %v476
        %v528 = vmul.f32 %v518, %v478
        %529 = vst [vmem:[#allocation2 + $0x40] sm:$0xff] %v521
        %530 = vst [vmem:[#allocation2 + $0x48] sm:$0xff] %v522
        %531 = vst [vmem:[#allocation2 + $0x50] sm:$0xff] %v523
        %532 = vst [vmem:[#allocation2 + $0x58] sm:$0xff] %v524
        %533 = vst [vmem:[#allocation2 + $0x60] sm:$0xff] %v525
        %534 = vst [vmem:[#allocation2 + $0x68] sm:$0xff] %v526
        %535 = vst [vmem:[#allocation2 + $0x70] sm:$0xff] %v527
        %536 = vst [vmem:[#allocation2 + $0x78] sm:$0xff] %v528
        %s537 = scalar_lea.vmem [#allocation3], 2
        %v538 = vld [vmem:[%s537] ss:$8 sm:$0x3]
        %v540 = vlaneseq
        %v541 = vshrl.u32 %v540, 7
        %v542 = vsub.s32 0, %v541
        %v543 = vrot.slane %v538, %v542
        %v544 = vlaneseq
        %v545 = vshrl.u32 %v544, 7
        %v546 = vsub.s32 1, %v545
        %v547 = vrot.slane %v538, %v546
        %v550 = vmul.f32 %v543, %v458
        %v551 = vmul.f32 %v547, %v460
        %v552 = vmul.f32 %v543, %v464
        %v553 = vmul.f32 %v547, %v466
        %v554 = vmul.f32 %v543, %v470
        %v555 = vmul.f32 %v547, %v472
        %v556 = vmul.f32 %v543, %v476
        %v557 = vmul.f32 %v547, %v478
        %558 = vst [vmem:[#allocation2 + $0x80] sm:$0xff] %v550
        %559 = vst [vmem:[#allocation2 + $0x88] sm:$0xff] %v551
        %560 = vst [vmem:[#allocation2 + $0x90] sm:$0xff] %v552
        %561 = vst [vmem:[#allocation2 + $0x98] sm:$0xff] %v553
        %562 = vst [vmem:[#allocation2 + $0xa0] sm:$0xff] %v554
        %563 = vst [vmem:[#allocation2 + $0xa8] sm:$0xff] %v555
        %564 = vst [vmem:[#allocation2 + $0xb0] sm:$0xff] %v556
        %565 = vst [vmem:[#allocation2 + $0xb8] sm:$0xff] %v557
        %s566 = scalar_lea.vmem [#allocation3], 3
        %v567 = vld [vmem:[%s566] ss:$8 sm:$0x3]
        %v569 = vlaneseq
        %v570 = vshrl.u32 %v569, 7
        %v571 = vsub.s32 0, %v570
        %v572 = vrot.slane %v567, %v571
        %v573 = vlaneseq
        %v574 = vshrl.u32 %v573, 7
        %v575 = vsub.s32 1, %v574
        %v576 = vrot.slane %v567, %v575
        %v579 = vmul.f32 %v572, %v458
        %v580 = vmul.f32 %v576, %v460
        %v581 = vmul.f32 %v572, %v464
        %v582 = vmul.f32 %v576, %v466
        %v583 = vmul.f32 %v572, %v470
        %v584 = vmul.f32 %v576, %v472
        %v585 = vmul.f32 %v572, %v476
        %v586 = vmul.f32 %v576, %v478
        %587 = vst [vmem:[#allocation2 + $0xc0] sm:$0xff] %v579
        %588 = vst [vmem:[#allocation2 + $0xc8] sm:$0xff] %v580
        %589 = vst [vmem:[#allocation2 + $0xd0] sm:$0xff] %v581
        %590 = vst [vmem:[#allocation2 + $0xd8] sm:$0xff] %v582
        %591 = vst [vmem:[#allocation2 + $0xe0] sm:$0xff] %v583
        %592 = vst [vmem:[#allocation2 + $0xe8] sm:$0xff] %v584
        %593 = vst [vmem:[#allocation2 + $0xf0] sm:$0xff] %v585
        %594 = vst [vmem:[#allocation2 + $0xf8] sm:$0xff] %v586
        %s595 = scalar_lea.vmem [#allocation3], 4
        %v596 = vld [vmem:[%s595] ss:$8 sm:$0x3]
        %v598 = vlaneseq
        %v599 = vshrl.u32 %v598, 7
        %v600 = vsub.s32 0, %v599
        %v601 = vrot.slane %v596, %v600
        %v602 = vlaneseq
        %v603 = vshrl.u32 %v602, 7
        %v604 = vsub.s32 1, %v603
        %v605 = vrot.slane %v596, %v604
        %v608 = vmul.f32 %v601, %v458
        %v609 = vmul.f32 %v605, %v460
        %v610 = vmul.f32 %v601, %v464
        %v611 = vmul.f32 %v605, %v466
        %v612 = vmul.f32 %v601, %v470
        %v613 = vmul.f32 %v605, %v472
        %v614 = vmul.f32 %v601, %v476
        %v615 = vmul.f32 %v605, %v478
        %616 = vst [vmem:[#allocation2 + $0x100] sm:$0xff] %v608
        %617 = vst [vmem:[#allocation2 + $0x108] sm:$0xff] %v609
        %618 = vst [vmem:[#allocation2 + $0x110] sm:$0xff] %v610
        %619 = vst [vmem:[#allocation2 + $0x118] sm:$0xff] %v611
        %620 = vst [vmem:[#allocation2 + $0x120] sm:$0xff] %v612
        %621 = vst [vmem:[#allocation2 + $0x128] sm:$0xff] %v613
        %622 = vst [vmem:[#allocation2 + $0x130] sm:$0xff] %v614
        %623 = vst [vmem:[#allocation2 + $0x138] sm:$0xff] %v615
        %s624 = scalar_lea.vmem [#allocation3], 5
        %v625 = vld [vmem:[%s624] ss:$8 sm:$0x3]
        %v627 = vlaneseq
        %v628 = vshrl.u32 %v627, 7
        %v629 = vsub.s32 0, %v628
        %v630 = vrot.slane %v625, %v629
        %v631 = vlaneseq
        %v632 = vshrl.u32 %v631, 7
        %v633 = vsub.s32 1, %v632
        %v634 = vrot.slane %v625, %v633
        %v637 = vmul.f32 %v630, %v458
        %v638 = vmul.f32 %v634, %v460
        %v639 = vmul.f32 %v630, %v464
        %v640 = vmul.f32 %v634, %v466
        %v641 = vmul.f32 %v630, %v470
        %v642 = vmul.f32 %v634, %v472
        %v643 = vmul.f32 %v630, %v476
        %v644 = vmul.f32 %v634, %v478
        %645 = vst [vmem:[#allocation2 + $0x140] sm:$0xff] %v637
        %646 = vst [vmem:[#allocation2 + $0x148] sm:$0xff] %v638
        %647 = vst [vmem:[#allocation2 + $0x150] sm:$0xff] %v639
        %648 = vst [vmem:[#allocation2 + $0x158] sm:$0xff] %v640
        %649 = vst [vmem:[#allocation2 + $0x160] sm:$0xff] %v641
        %650 = vst [vmem:[#allocation2 + $0x168] sm:$0xff] %v642
        %651 = vst [vmem:[#allocation2 + $0x170] sm:$0xff] %v643
        %652 = vst [vmem:[#allocation2 + $0x178] sm:$0xff] %v644
        %s653 = scalar_lea.vmem [#allocation3], 6
        %v654 = vld [vmem:[%s653] ss:$8 sm:$0x3]
        %v656 = vlaneseq
        %v657 = vshrl.u32 %v656, 7
        %v658 = vsub.s32 0, %v657
        %v659 = vrot.slane %v654, %v658
        %v660 = vlaneseq
        %v661 = vshrl.u32 %v660, 7
        %v662 = vsub.s32 1, %v661
        %v663 = vrot.slane %v654, %v662
        %v666 = vmul.f32 %v659, %v458
        %v667 = vmul.f32 %v663, %v460
        %v668 = vmul.f32 %v659, %v464
        %v669 = vmul.f32 %v663, %v466
        %v670 = vmul.f32 %v659, %v470
        %v671 = vmul.f32 %v663, %v472
        %v672 = vmul.f32 %v659, %v476
        %v673 = vmul.f32 %v663, %v478
        %674 = vst [vmem:[#allocation2 + $0x180] sm:$0xff] %v666
        %675 = vst [vmem:[#allocation2 + $0x188] sm:$0xff] %v667
        %676 = vst [vmem:[#allocation2 + $0x190] sm:$0xff] %v668
        %677 = vst [vmem:[#allocation2 + $0x198] sm:$0xff] %v669
        %678 = vst [vmem:[#allocation2 + $0x1a0] sm:$0xff] %v670
        %679 = vst [vmem:[#allocation2 + $0x1a8] sm:$0xff] %v671
        %680 = vst [vmem:[#allocation2 + $0x1b0] sm:$0xff] %v672
        %681 = vst [vmem:[#allocation2 + $0x1b8] sm:$0xff] %v673
        %s682 = scalar_lea.vmem [#allocation3], 7
        %v683 = vld [vmem:[%s682] ss:$8 sm:$0x3]
        %v685 = vlaneseq
        %v686 = vshrl.u32 %v685, 7
        %v687 = vsub.s32 0, %v686
        %v688 = vrot.slane %v683, %v687
        %v689 = vlaneseq
        %v690 = vshrl.u32 %v689, 7
        %v691 = vsub.s32 1, %v690
        %v692 = vrot.slane %v683, %v691
        %v695 = vmul.f32 %v688, %v458
        %v696 = vmul.f32 %v692, %v460
        %v697 = vmul.f32 %v688, %v464
        %v698 = vmul.f32 %v692, %v466
        %v699 = vmul.f32 %v688, %v470
        %v700 = vmul.f32 %v692, %v472
        %v701 = vmul.f32 %v688, %v476
        %v702 = vmul.f32 %v692, %v478
        %703 = vst [vmem:[#allocation2 + $0x1c0] sm:$0xff] %v695
        %704 = vst [vmem:[#allocation2 + $0x1c8] sm:$0xff] %v696
        %705 = vst [vmem:[#allocation2 + $0x1d0] sm:$0xff] %v697
        %706 = vst [vmem:[#allocation2 + $0x1d8] sm:$0xff] %v698
        %707 = vst [vmem:[#allocation2 + $0x1e0] sm:$0xff] %v699
        %708 = vst [vmem:[#allocation2 + $0x1e8] sm:$0xff] %v700
        %709 = vst [vmem:[#allocation2 + $0x1f0] sm:$0xff] %v701
        %710 = vst [vmem:[#allocation2 + $0x1f8] sm:$0xff] %v702
        %s711 = scalar_lea.vmem [#allocation3], 16
        %v712 = vld [vmem:[%s711] ss:$8 sm:$0x3]
        %v714 = vlaneseq
        %v715 = vshrl.u32 %v714, 7
        %v716 = vsub.s32 0, %v715
        %v717 = vrot.slane %v712, %v716
        %v718 = vlaneseq
        %v719 = vshrl.u32 %v718, 7
        %v720 = vsub.s32 1, %v719
        %v721 = vrot.slane %v712, %v720
        %v724 = vmul.f32 %v717, %v458
        %v725 = vmul.f32 %v721, %v460
        %v726 = vmul.f32 %v717, %v464
        %v727 = vmul.f32 %v721, %v466
        %v728 = vmul.f32 %v717, %v470
        %v729 = vmul.f32 %v721, %v472
        %v730 = vmul.f32 %v717, %v476
        %v731 = vmul.f32 %v721, %v478
        %732 = vst [vmem:[#allocation2 + $0x200] sm:$0xff] %v724
        %733 = vst [vmem:[#allocation2 + $0x208] sm:$0xff] %v725
        %734 = vst [vmem:[#allocation2 + $0x210] sm:$0xff] %v726
        %735 = vst [vmem:[#allocation2 + $0x218] sm:$0xff] %v727
        %736 = vst [vmem:[#allocation2 + $0x220] sm:$0xff] %v728
        %737 = vst [vmem:[#allocation2 + $0x228] sm:$0xff] %v729
        %738 = vst [vmem:[#allocation2 + $0x230] sm:$0xff] %v730
        %739 = vst [vmem:[#allocation2 + $0x238] sm:$0xff] %v731
        %v740 = vld [vmem:[%s4] sm:$0xff]
        %v741 = vld [vmem:[%s4 + $0x8] sm:$0xff]
        %v742 = vld [vmem:[%s4 + $0x10] sm:$0xff]
        %v743 = vld [vmem:[%s4 + $0x18] sm:$0xff]
        %v744 = vld [vmem:[%s4 + $0x20] sm:$0xff]
        %v745 = vld [vmem:[%s4 + $0x28] sm:$0xff]
        %v746 = vld [vmem:[%s4 + $0x30] sm:$0xff]
        %v747 = vld [vmem:[%s4 + $0x38] sm:$0xff]
        %v748 = vld [vmem:[%s4 + $0x40] sm:$0xff]
        %v749 = vld [vmem:[%s4 + $0x48] sm:$0xff]
        %v750 = vld [vmem:[%s4 + $0x50] sm:$0xff]
        %v751 = vld [vmem:[%s4 + $0x58] sm:$0xff]
        %v752 = vld [vmem:[#allocation2] sm:$0xff]
        %v753 = vld [vmem:[#allocation2 + $0x8] sm:$0xff]
        %v754 = vld [vmem:[#allocation2 + $0x10] sm:$0xff]
        %v755 = vld [vmem:[#allocation2 + $0x18] sm:$0xff]
        %v756 = vld [vmem:[#allocation2 + $0x20] sm:$0xff]
        %v757 = vld [vmem:[#allocation2 + $0x28] sm:$0xff]
        %v758 = vld [vmem:[#allocation2 + $0x30] sm:$0xff]
        %v759 = vld [vmem:[#allocation2 + $0x38] sm:$0xff]
        %v760 = vld [vmem:[#allocation2 + $0x40] sm:$0xff]
        %v761 = vld [vmem:[#allocation2 + $0x48] sm:$0xff]
        %v762 = vld [vmem:[#allocation2 + $0x50] sm:$0xff]
        %v763 = vld [vmem:[#allocation2 + $0x58] sm:$0xff]
        %v764 = vld [vmem:[#allocation2 + $0x60] sm:$0xff]
        %v765 = vld [vmem:[#allocation2 + $0x68] sm:$0xff]
        %v766 = vld [vmem:[#allocation2 + $0x70] sm:$0xff]
        %v767 = vld [vmem:[#allocation2 + $0x78] sm:$0xff]
        %v768 = vld [vmem:[#allocation2 + $0x80] sm:$0xff]
        %v769 = vld [vmem:[#allocation2 + $0x88] sm:$0xff]
        %v770 = vld [vmem:[#allocation2 + $0x90] sm:$0xff]
        %v771 = vld [vmem:[#allocation2 + $0x98] sm:$0xff]
        %v772 = vld [vmem:[#allocation2 + $0xa0] sm:$0xff]
        %v773 = vld [vmem:[#allocation2 + $0xa8] sm:$0xff]
        %v774 = vld [vmem:[#allocation2 + $0xb0] sm:$0xff]
        %v775 = vld [vmem:[#allocation2 + $0xb8] sm:$0xff]
        %v776 = vld [vmem:[#allocation2 + $0xc0] sm:$0xff]
        %v777 = vld [vmem:[#allocation2 + $0xc8] sm:$0xff]
        %v778 = vld [vmem:[#allocation2 + $0xd0] sm:$0xff]
        %v779 = vld [vmem:[#allocation2 + $0xd8] sm:$0xff]
        %v780 = vld [vmem:[#allocation2 + $0xe0] sm:$0xff]
        %v781 = vld [vmem:[#allocation2 + $0xe8] sm:$0xff]
        %v782 = vld [vmem:[#allocation2 + $0xf0] sm:$0xff]
        %v783 = vld [vmem:[#allocation2 + $0xf8] sm:$0xff]
        %v784 = vld [vmem:[#allocation2 + $0x100] sm:$0xff]
        %v785 = vld [vmem:[#allocation2 + $0x108] sm:$0xff]
        %v786 = vld [vmem:[#allocation2 + $0x110] sm:$0xff]
        %v787 = vld [vmem:[#allocation2 + $0x118] sm:$0xff]
        %v788 = vld [vmem:[#allocation2 + $0x120] sm:$0xff]
        %v789 = vld [vmem:[#allocation2 + $0x128] sm:$0xff]
        %v790 = vld [vmem:[#allocation2 + $0x130] sm:$0xff]
        %v791 = vld [vmem:[#allocation2 + $0x138] sm:$0xff]
        %v792 = vld [vmem:[#allocation2 + $0x140] sm:$0xff]
        %v793 = vld [vmem:[#allocation2 + $0x148] sm:$0xff]
        %v794 = vld [vmem:[#allocation2 + $0x150] sm:$0xff]
        %v795 = vld [vmem:[#allocation2 + $0x158] sm:$0xff]
        %v796 = vld [vmem:[#allocation2 + $0x160] sm:$0xff]
        %v797 = vld [vmem:[#allocation2 + $0x168] sm:$0xff]
        %v798 = vld [vmem:[#allocation2 + $0x170] sm:$0xff]
        %v799 = vld [vmem:[#allocation2 + $0x178] sm:$0xff]
        %v800 = vld [vmem:[#allocation2 + $0x180] sm:$0xff]
        %v801 = vld [vmem:[#allocation2 + $0x188] sm:$0xff]
        %v802 = vld [vmem:[#allocation2 + $0x190] sm:$0xff]
        %v803 = vld [vmem:[#allocation2 + $0x198] sm:$0xff]
        %v804 = vld [vmem:[#allocation2 + $0x1a0] sm:$0xff]
        %v805 = vld [vmem:[#allocation2 + $0x1a8] sm:$0xff]
        %v806 = vld [vmem:[#allocation2 + $0x1b0] sm:$0xff]
        %v807 = vld [vmem:[#allocation2 + $0x1b8] sm:$0xff]
        %v808 = vld [vmem:[#allocation2 + $0x1c0] sm:$0xff]
        %v809 = vld [vmem:[#allocation2 + $0x1c8] sm:$0xff]
        %v810 = vld [vmem:[#allocation2 + $0x1d0] sm:$0xff]
        %v811 = vld [vmem:[#allocation2 + $0x1d8] sm:$0xff]
        %v812 = vld [vmem:[#allocation2 + $0x1e0] sm:$0xff]
        %v813 = vld [vmem:[#allocation2 + $0x1e8] sm:$0xff]
        %v814 = vld [vmem:[#allocation2 + $0x1f0] sm:$0xff]
        %v815 = vld [vmem:[#allocation2 + $0x1f8] sm:$0xff]
        %v816 = vld [vmem:[#allocation2 + $0x200] sm:$0xff]
        %v817 = vld [vmem:[#allocation2 + $0x208] sm:$0xff]
        %v818 = vld [vmem:[#allocation2 + $0x210] sm:$0xff]
        %v819 = vld [vmem:[#allocation2 + $0x218] sm:$0xff]
        %v820 = vld [vmem:[#allocation2 + $0x220] sm:$0xff]
        %v821 = vld [vmem:[#allocation2 + $0x228] sm:$0xff]
        %v822 = vld [vmem:[#allocation2 + $0x230] sm:$0xff]
        %v823 = vld [vmem:[#allocation2 + $0x238] sm:$0xff]
        %825 = vset.pattern.permute.xlu0 0
        %826 = vperm.xlu0 %825, %v361
        %v827 = vpop.permute.xlu0 %826
        %830 = vset.pattern.permute.xlu0 0
        %831 = vperm.xlu0 %830, %v362
        %v832 = vpop.permute.xlu0 %831
        %835 = vset.pattern.permute.xlu0 0
        %836 = vperm.xlu0 %835, %v363
        %v837 = vpop.permute.xlu0 %836
        %840 = vset.pattern.permute.xlu0 0
        %841 = vperm.xlu0 %840, %v364
        %v842 = vpop.permute.xlu0 %841
        %vm844 = vcmask 261120
        %v846 = vsel %vm844, %v742, 0
        %v849 = vsel %vm844, %v745, 0
        %v852 = vsel %vm844, %v748, 0
        %v855 = vsel %vm844, %v751, 0
        %857 = vmatprep.subr.mxu0 %v753
        %858 = vmatpush1.msra.mxu0 %v752
        %859 = vmatprep.subr.mxu0 %v755
        %860 = vmatpush1.msra.mxu0 %v754
        %861 = vmatprep.subr.mxu0 %v757
        %862 = vmatpush1.msra.mxu0 %v756
        %863 = vmatprep.subr.mxu0 %v759
        %864 = vmatpush1.msra.mxu0 %v758
        %865 = vmatprep.subr.mxu0 %v761
        %866 = vmatpush1.msra.mxu0 %v760
        %867 = vmatprep.subr.mxu0 %v763
        %868 = vmatpush1.msra.mxu0 %v762
        %869 = vmatprep.subr.mxu0 %v765
        %870 = vmatpush1.msra.mxu0 %v764
        %871 = vmatprep.subr.mxu0 %v767
        %872 = vmatpush1.msra.mxu0 %v766
        %873 = vmatprep.subr.mxu0 %v769
        %874 = vmatpush1.msra.mxu0 %v768
        %875 = vmatprep.subr.mxu0 %v771
        %876 = vmatpush1.msra.mxu0 %v770
        %877 = vmatprep.subr.mxu0 %v773
        %878 = vmatpush1.msra.mxu0 %v772
        %879 = vmatprep.subr.mxu0 %v775
        %880 = vmatpush1.msra.mxu0 %v774
        %881 = vmatprep.subr.mxu0 %v777
        %882 = vmatpush1.msra.mxu0 %v776
        %883 = vmatprep.subr.mxu0 %v779
        %884 = vmatpush1.msra.mxu0 %v778
        %885 = vmatprep.subr.mxu0 %v781
        %886 = vmatpush1.msra.mxu0 %v780
        %887 = vmatprep.subr.mxu0 %v783
        %888 = vmatpush1.msra.mxu0 %v782
        %889 = vmatprep.subr.mxu0 %v785
        %890 = vmatpush1.msra.mxu0 %v784
        %891 = vmatprep.subr.mxu0 %v787
        %892 = vmatpush1.msra.mxu0 %v786
        %893 = vmatprep.subr.mxu0 %v789
        %894 = vmatpush1.msra.mxu0 %v788
        %895 = vmatprep.subr.mxu0 %v791
        %896 = vmatpush1.msra.mxu0 %v790
        %897 = vmatprep.subr.mxu0 %v793
        %898 = vmatpush1.msra.mxu0 %v792
        %899 = vmatprep.subr.mxu0 %v795
        %900 = vmatpush1.msra.mxu0 %v794
        %901 = vmatprep.subr.mxu0 %v797
        %902 = vmatpush1.msra.mxu0 %v796
        %903 = vmatprep.subr.mxu0 %v799
        %904 = vmatpush1.msra.mxu0 %v798
        %905 = vmatprep.subr.mxu0 %v801
        %906 = vmatpush1.msra.mxu0 %v800
        %907 = vmatprep.subr.mxu0 %v803
        %908 = vmatpush1.msra.mxu0 %v802
        %909 = vmatprep.subr.mxu0 %v805
        %910 = vmatpush1.msra.mxu0 %v804
        %911 = vmatprep.subr.mxu0 %v807
        %912 = vmatpush1.msra.mxu0 %v806
        %913 = vmatprep.subr.mxu0 %v809
        %914 = vmatpush1.msra.mxu0 %v808
        %915 = vmatprep.subr.mxu0 %v811
        %916 = vmatpush1.msra.mxu0 %v810
        %917 = vmatprep.subr.mxu0 %v813
        %918 = vmatpush1.msra.mxu0 %v812
        %919 = vmatprep.subr.mxu0 %v815
        %920 = vmatpush1.msra.mxu0 %v814
        %921 = vmatprep.mubr.f32.mxu0 %v741
        %922 = vmatmul.mubr.f32.gmra.mrb[0].mxu0 %v740
        %v923 = vpop.f32.mrb[0].mxu0
        %v924 = vadd.f32 %v827, %v923
        %v925 = vpop.f32.mrb[0].mxu0
        %v926 = vadd.f32 %v827, %v925
        %927 = vmatprep.mubr.f32.mxu0 %v744
        %928 = vmatmul.mubr.f32.gmra.mrb[0].mxu0 %v743
        %v929 = vpop.f32.mrb[0].mxu0
        %v930 = vadd.f32 %v832, %v929
        %v931 = vpop.f32.mrb[0].mxu0
        %v932 = vadd.f32 %v832, %v931
        %933 = vmatprep.mubr.f32.mxu0 %v747
        %934 = vmatmul.mubr.f32.gmra.mrb[0].mxu0 %v746
        %v935 = vpop.f32.mrb[0].mxu0
        %v936 = vadd.f32 %v837, %v935
        %v937 = vpop.f32.mrb[0].mxu0
        %v938 = vadd.f32 %v837, %v937
        %939 = vmatprep.mubr.f32.mxu0 %v750
        %940 = vmatmul.mubr.f32.gmra.mrb[0].mxu0 %v749
        %v941 = vpop.f32.mrb[0].mxu0
        %v942 = vadd.f32 %v842, %v941
        %v943 = vpop.f32.mrb[0].mxu0
        %v944 = vadd.f32 %v842, %v943
        %945 = vdwg.mxu0
        %946 = vmatprep.subr.mxu0 %v817
        %947 = vmatpush1.msra.mxu0 %v816
        %948 = vmatprep.subr.mxu0 %v819
        %949 = vmatpush1.msra.mxu0 %v818
        %950 = vmatprep.subr.mxu0 %v821
        %951 = vmatpush1.msra.mxu0 %v820
        %952 = vmatprep.subr.mxu0 %v823
        %953 = vmatpush1.msra.mxu0 %v822
        %954 = vmatprep.subr.mxu0 0.0
        %955 = vmatpush1.msra.mxu0 0.0
        %956 = vmatprep.subr.mxu0 0.0
        %957 = vmatpush1.msra.mxu0 0.0
        %958 = vmatprep.subr.mxu0 0.0
        %959 = vmatpush1.msra.mxu0 0.0
        %960 = vmatprep.subr.mxu0 0.0
        %961 = vmatpush1.msra.mxu0 0.0
        %962 = vmatprep.subr.mxu0 0.0
        %963 = vmatpush1.msra.mxu0 0.0
        %964 = vmatprep.subr.mxu0 0.0
        %965 = vmatpush1.msra.mxu0 0.0
        %966 = vmatprep.subr.mxu0 0.0
        %967 = vmatpush1.msra.mxu0 0.0
        %968 = vmatprep.subr.mxu0 0.0
        %969 = vmatpush1.msra.mxu0 0.0
        %970 = vmatprep.subr.mxu0 0.0
        %971 = vmatpush1.msra.mxu0 0.0
        %972 = vmatprep.subr.mxu0 0.0
        %973 = vmatpush1.msra.mxu0 0.0
        %974 = vmatprep.subr.mxu0 0.0
        %975 = vmatpush1.msra.mxu0 0.0
        %976 = vmatprep.subr.mxu0 0.0
        %977 = vmatpush1.msra.mxu0 0.0
        %978 = vmatprep.subr.mxu0 0.0
        %979 = vmatpush1.msra.mxu0 0.0
        %980 = vmatprep.subr.mxu0 0.0
        %981 = vmatpush1.msra.mxu0 0.0
        %982 = vmatprep.subr.mxu0 0.0
        %983 = vmatpush1.msra.mxu0 0.0
        %984 = vmatprep.subr.mxu0 0.0
        %985 = vmatpush1.msra.mxu0 0.0
        %986 = vmatprep.subr.mxu0 0.0
        %987 = vmatpush1.msra.mxu0 0.0
        %988 = vmatprep.subr.mxu0 0.0
        %989 = vmatpush1.msra.mxu0 0.0
        %990 = vmatprep.subr.mxu0 0.0
        %991 = vmatpush1.msra.mxu0 0.0
        %992 = vmatprep.subr.mxu0 0.0
        %993 = vmatpush1.msra.mxu0 0.0
        %994 = vmatprep.subr.mxu0 0.0
        %995 = vmatpush1.msra.mxu0 0.0
        %996 = vmatprep.subr.mxu0 0.0
        %997 = vmatpush1.msra.mxu0 0.0
        %998 = vmatprep.subr.mxu0 0.0
        %999 = vmatpush1.msra.mxu0 0.0
        %1000 = vmatprep.subr.mxu0 0.0
        %1001 = vmatpush1.msra.mxu0 0.0
        %1002 = vmatprep.subr.mxu0 0.0
        %1003 = vmatpush1.msra.mxu0 0.0
        %1004 = vmatprep.subr.mxu0 0.0
        %1005 = vmatpush1.msra.mxu0 0.0
        %1006 = vmatprep.subr.mxu0 0.0
        %1007 = vmatpush1.msra.mxu0 0.0
        %1008 = vmatprep.subr.mxu0 0.0
        %1009 = vmatpush1.msra.mxu0 0.0
        %1010 = vmatprep.mubr.f32.mxu0 0.0
        %1011 = vmatmul.mubr.f32.gmra.mrb[0].mxu0 %v846
        %v1012 = vpop.f32.mrb[0].mxu0
        %v1013 = vadd.f32 %v924, %v1012
        %v1014 = vpop.f32.mrb[0].mxu0
        %v1015 = vadd.f32 %v926, %v1014
        %1016 = vmatprep.mubr.f32.mxu0 0.0
        %1017 = vmatmul.mubr.f32.gmra.mrb[0].mxu0 %v849
        %v1018 = vpop.f32.mrb[0].mxu0
        %v1019 = vadd.f32 %v930, %v1018
        %v1020 = vpop.f32.mrb[0].mxu0
        %v1021 = vadd.f32 %v932, %v1020
        %1022 = vmatprep.mubr.f32.mxu0 0.0
        %1023 = vmatmul.mubr.f32.gmra.mrb[0].mxu0 %v852
        %v1024 = vpop.f32.mrb[0].mxu0
        %v1025 = vadd.f32 %v936, %v1024
        %v1026 = vpop.f32.mrb[0].mxu0
        %v1027 = vadd.f32 %v938, %v1026
        %1028 = vmatprep.mubr.f32.mxu0 0.0
        %1029 = vmatmul.mubr.f32.gmra.mrb[0].mxu0 %v855
        %v1030 = vpop.f32.mrb[0].mxu0
        %v1031 = vadd.f32 %v942, %v1030
        %v1032 = vpop.f32.mrb[0].mxu0
        %v1033 = vadd.f32 %v944, %v1032
        %1034 = vdwg.mxu0
        %v1035 = vld [vmem:[#allocation6] sm:$0xff]
        %v1036 = vld [vmem:[#allocation6 + $0x8] sm:$0xff]
        %v1037 = vld [vmem:[#allocation6 + $0x10] sm:$0xff]
        %v1038 = vld [vmem:[#allocation6 + $0x18] sm:$0xff]
        %v1039 = vld [vmem:[#allocation6 + $0x20] sm:$0xff]
        %v1040 = vld [vmem:[#allocation6 + $0x28] sm:$0xff]
        %v1041 = vld [vmem:[#allocation6 + $0x30] sm:$0xff]
        %v1042 = vld [vmem:[#allocation6 + $0x38] sm:$0xff]
        %v1043 = vadd.f32 %v1013, %v1035
        %v1044 = vadd.f32 %v1015, %v1036
        %v1045 = vadd.f32 %v1019, %v1037
        %v1046 = vadd.f32 %v1021, %v1038
        %v1047 = vadd.f32 %v1025, %v1039
        %v1048 = vadd.f32 %v1027, %v1040
        %v1049 = vadd.f32 %v1031, %v1041
        %v1050 = vadd.f32 %v1033, %v1042
        %v1051 = vmax.f32 %v1043, 0.0
        %v1052 = vmax.f32 %v1044, 0.0
        %v1053 = vmax.f32 %v1045, 0.0
        %v1054 = vmax.f32 %v1046, 0.0
        %v1055 = vmax.f32 %v1047, 0.0
        %v1056 = vmax.f32 %v1048, 0.0
        %v1057 = vmax.f32 %v1049, 0.0
        %v1058 = vmax.f32 %v1050, 0.0
        %1059 = vrot.lane.b32.xlu0 %v1051, 9
        %v1060 = vpop.permute.xlu0 %1059
        %1061 = vrot.lane.b32.xlu0 %v1053, 9
        %v1062 = vpop.permute.xlu0 %1061
        %1063 = vrot.lane.b32.xlu0 %v1055, 9
        %v1064 = vpop.permute.xlu0 %1063
        %1065 = vrot.lane.b32.xlu0 %v1057, 9
        %v1066 = vpop.permute.xlu0 %1065
        %1067 = vrot.lane.b32.xlu0 %v1052, 9
        %v1068 = vpop.permute.xlu0 %1067
        %1069 = vrot.lane.b32.xlu0 %v1054, 9
        %v1070 = vpop.permute.xlu0 %1069
        %1071 = vrot.lane.b32.xlu0 %v1056, 9
        %v1072 = vpop.permute.xlu0 %1071
        %1073 = vrot.lane.b32.xlu0 %v1058, 9
        %v1074 = vpop.permute.xlu0 %1073
        %v1075 = vlaneseq
        %v1076 = vand.u32 %v1075, 127
        %vm1077 = vcmp.lt.s32.totalorder %v1076, 9
        %v1078 = vsel %vm1077, %v1060, %v1068
        %v1079 = vsel %vm1077, %v1062, %v1070
        %v1080 = vsel %vm1077, %v1064, %v1072
        %v1081 = vsel %vm1077, %v1066, %v1074
        %v1082 = vsel %vm1077, %v1068, %v1060
        %v1083 = vsel %vm1077, %v1070, %v1062
        %v1084 = vsel %vm1077, %v1072, %v1064
        %v1085 = vsel %vm1077, %v1074, %v1066
        %v1086 = vld [vmem:[#allocation3] ss:$8 sm:$0x3]
        %v1088 = vlaneseq
        %v1089 = vshrl.u32 %v1088, 7
        %v1090 = vsub.s32 0, %v1089
        %v1091 = vrot.slane %v1086, %v1090
        %v1092 = vlaneseq
        %v1093 = vshrl.u32 %v1092, 7
        %v1094 = vsub.s32 1, %v1093
        %v1095 = vrot.slane %v1086, %v1094
        %v1098 = vmul.f32 %v1091, %v1082
        %v1099 = vmul.f32 %v1095, %v1078
        %v1100 = vmul.f32 %v1091, %v1083
        %v1101 = vmul.f32 %v1095, %v1079
        %v1102 = vmul.f32 %v1091, %v1084
        %v1103 = vmul.f32 %v1095, %v1080
        %v1104 = vmul.f32 %v1091, %v1085
        %v1105 = vmul.f32 %v1095, %v1081
        %1106 = vst [vmem:[#allocation2] sm:$0xff] %v1098
        %1107 = vst [vmem:[#allocation2 + $0x8] sm:$0xff] %v1099
        %1108 = vst [vmem:[#allocation2 + $0x10] sm:$0xff] %v1100
        %1109 = vst [vmem:[#allocation2 + $0x18] sm:$0xff] %v1101
        %1110 = vst [vmem:[#allocation2 + $0x20] sm:$0xff] %v1102
        %1111 = vst [vmem:[#allocation2 + $0x28] sm:$0xff] %v1103
        %1112 = vst [vmem:[#allocation2 + $0x30] sm:$0xff] %v1104
        %1113 = vst [vmem:[#allocation2 + $0x38] sm:$0xff] %v1105
        %1114 = vrot.lane.b32.xlu0 %v1051, 8
        %v1115 = vpop.permute.xlu0 %1114
        %1116 = vrot.lane.b32.xlu0 %v1053, 8
        %v1117 = vpop.permute.xlu0 %1116
        %1118 = vrot.lane.b32.xlu0 %v1055, 8
        %v1119 = vpop.permute.xlu0 %1118
        %1120 = vrot.lane.b32.xlu0 %v1057, 8
        %v1121 = vpop.permute.xlu0 %1120
        %1122 = vrot.lane.b32.xlu0 %v1052, 8
        %v1123 = vpop.permute.xlu0 %1122
        %1124 = vrot.lane.b32.xlu0 %v1054, 8
        %v1125 = vpop.permute.xlu0 %1124
        %1126 = vrot.lane.b32.xlu0 %v1056, 8
        %v1127 = vpop.permute.xlu0 %1126
        %1128 = vrot.lane.b32.xlu0 %v1058, 8
        %v1129 = vpop.permute.xlu0 %1128
        %vm1130 = vcmp.lt.s32.totalorder %v1076, 8
        %v1131 = vsel %vm1130, %v1115, %v1123
        %v1132 = vsel %vm1130, %v1117, %v1125
        %v1133 = vsel %vm1130, %v1119, %v1127
        %v1134 = vsel %vm1130, %v1121, %v1129
        %v1135 = vsel %vm1130, %v1123, %v1115
        %v1136 = vsel %vm1130, %v1125, %v1117
        %v1137 = vsel %vm1130, %v1127, %v1119
        %v1138 = vsel %vm1130, %v1129, %v1121
        %v1139 = vld [vmem:[%s508] ss:$8 sm:$0x3]
        %v1141 = vlaneseq
        %v1142 = vshrl.u32 %v1141, 7
        %v1143 = vsub.s32 0, %v1142
        %v1144 = vrot.slane %v1139, %v1143
        %v1145 = vlaneseq
        %v1146 = vshrl.u32 %v1145, 7
        %v1147 = vsub.s32 1, %v1146
        %v1148 = vrot.slane %v1139, %v1147
        %v1151 = vmul.f32 %v1144, %v1135
        %v1152 = vmul.f32 %v1148, %v1131
        %v1153 = vmul.f32 %v1144, %v1136
        %v1154 = vmul.f32 %v1148, %v1132
        %v1155 = vmul.f32 %v1144, %v1137
        %v1156 = vmul.f32 %v1148, %v1133
        %v1157 = vmul.f32 %v1144, %v1138
        %v1158 = vmul.f32 %v1148, %v1134
        %1159 = vst [vmem:[#allocation2 + $0x40] sm:$0xff] %v1151
        %1160 = vst [vmem:[#allocation2 + $0x48] sm:$0xff] %v1152
        %1161 = vst [vmem:[#allocation2 + $0x50] sm:$0xff] %v1153
        %1162 = vst [vmem:[#allocation2 + $0x58] sm:$0xff] %v1154
        %1163 = vst [vmem:[#allocation2 + $0x60] sm:$0xff] %v1155
        %1164 = vst [vmem:[#allocation2 + $0x68] sm:$0xff] %v1156
        %1165 = vst [vmem:[#allocation2 + $0x70] sm:$0xff] %v1157
        %1166 = vst [vmem:[#allocation2 + $0x78] sm:$0xff] %v1158
        %1167 = vrot.lane.b32.xlu0 %v1051, 7
        %v1168 = vpop.permute.xlu0 %1167
        %1169 = vrot.lane.b32.xlu0 %v1053, 7
        %v1170 = vpop.permute.xlu0 %1169
        %1171 = vrot.lane.b32.xlu0 %v1055, 7
        %v1172 = vpop.permute.xlu0 %1171
        %1173 = vrot.lane.b32.xlu0 %v1057, 7
        %v1174 = vpop.permute.xlu0 %1173
        %1175 = vrot.lane.b32.xlu0 %v1052, 7
        %v1176 = vpop.permute.xlu0 %1175
        %1177 = vrot.lane.b32.xlu0 %v1054, 7
        %v1178 = vpop.permute.xlu0 %1177
        %1179 = vrot.lane.b32.xlu0 %v1056, 7
        %v1180 = vpop.permute.xlu0 %1179
        %1181 = vrot.lane.b32.xlu0 %v1058, 7
        %v1182 = vpop.permute.xlu0 %1181
        %vm1183 = vcmp.lt.s32.totalorder %v1076, 7
        %v1184 = vsel %vm1183, %v1168, %v1176
        %v1185 = vsel %vm1183, %v1170, %v1178
        %v1186 = vsel %vm1183, %v1172, %v1180
        %v1187 = vsel %vm1183, %v1174, %v1182
        %v1188 = vsel %vm1183, %v1176, %v1168
        %v1189 = vsel %vm1183, %v1178, %v1170
        %v1190 = vsel %vm1183, %v1180, %v1172
        %v1191 = vsel %vm1183, %v1182, %v1174
        %v1192 = vld [vmem:[%s537] ss:$8 sm:$0x3]
        %v1194 = vlaneseq
        %v1195 = vshrl.u32 %v1194, 7
        %v1196 = vsub.s32 0, %v1195
        %v1197 = vrot.slane %v1192, %v1196
        %v1198 = vlaneseq
        %v1199 = vshrl.u32 %v1198, 7
        %v1200 = vsub.s32 1, %v1199
        %v1201 = vrot.slane %v1192, %v1200
        %v1204 = vmul.f32 %v1197, %v1188
        %v1205 = vmul.f32 %v1201, %v1184
        %v1206 = vmul.f32 %v1197, %v1189
        %v1207 = vmul.f32 %v1201, %v1185
        %v1208 = vmul.f32 %v1197, %v1190
        %v1209 = vmul.f32 %v1201, %v1186
        %v1210 = vmul.f32 %v1197, %v1191
        %v1211 = vmul.f32 %v1201, %v1187
        %1212 = vst [vmem:[#allocation2 + $0x80] sm:$0xff] %v1204
        %1213 = vst [vmem:[#allocation2 + $0x88] sm:$0xff] %v1205
        %1214 = vst [vmem:[#allocation2 + $0x90] sm:$0xff] %v1206
        %1215 = vst [vmem:[#allocation2 + $0x98] sm:$0xff] %v1207
        %1216 = vst [vmem:[#allocation2 + $0xa0] sm:$0xff] %v1208
        %1217 = vst [vmem:[#allocation2 + $0xa8] sm:$0xff] %v1209
        %1218 = vst [vmem:[#allocation2 + $0xb0] sm:$0xff] %v1210
        %1219 = vst [vmem:[#allocation2 + $0xb8] sm:$0xff] %v1211
        %1220 = vrot.lane.b32.xlu0 %v1051, 1
        %v1221 = vpop.permute.xlu0 %1220
        %1222 = vrot.lane.b32.xlu0 %v1053, 1
        %v1223 = vpop.permute.xlu0 %1222
        %1224 = vrot.lane.b32.xlu0 %v1055, 1
        %v1225 = vpop.permute.xlu0 %1224
        %1226 = vrot.lane.b32.xlu0 %v1057, 1
        %v1227 = vpop.permute.xlu0 %1226
        %1228 = vrot.lane.b32.xlu0 %v1052, 1
        %v1229 = vpop.permute.xlu0 %1228
        %1230 = vrot.lane.b32.xlu0 %v1054, 1
        %v1231 = vpop.permute.xlu0 %1230
        %1232 = vrot.lane.b32.xlu0 %v1056, 1
        %v1233 = vpop.permute.xlu0 %1232
        %1234 = vrot.lane.b32.xlu0 %v1058, 1
        %v1235 = vpop.permute.xlu0 %1234
        %vm1236 = vcmp.lt.s32.totalorder %v1076, 1
        %v1237 = vsel %vm1236, %v1221, %v1229
        %v1238 = vsel %vm1236, %v1223, %v1231
        %v1239 = vsel %vm1236, %v1225, %v1233
        %v1240 = vsel %vm1236, %v1227, %v1235
        %v1241 = vsel %vm1236, %v1229, %v1221
        %v1242 = vsel %vm1236, %v1231, %v1223
        %v1243 = vsel %vm1236, %v1233, %v1225
        %v1244 = vsel %vm1236, %v1235, %v1227
        %v1245 = vld [vmem:[%s566] ss:$8 sm:$0x3]
        %v1247 = vlaneseq
        %v1248 = vshrl.u32 %v1247, 7
        %v1249 = vsub.s32 0, %v1248
        %v1250 = vrot.slane %v1245, %v1249
        %v1251 = vlaneseq
        %v1252 = vshrl.u32 %v1251, 7
        %v1253 = vsub.s32 1, %v1252
        %v1254 = vrot.slane %v1245, %v1253
        %v1257 = vmul.f32 %v1250, %v1241
        %v1258 = vmul.f32 %v1254, %v1237
        %v1259 = vmul.f32 %v1250, %v1242
        %v1260 = vmul.f32 %v1254, %v1238
        %v1261 = vmul.f32 %v1250, %v1243
        %v1262 = vmul.f32 %v1254, %v1239
        %v1263 = vmul.f32 %v1250, %v1244
        %v1264 = vmul.f32 %v1254, %v1240
        %1265 = vst [vmem:[#allocation2 + $0xc0] sm:$0xff] %v1257
        %1266 = vst [vmem:[#allocation2 + $0xc8] sm:$0xff] %v1258
        %1267 = vst [vmem:[#allocation2 + $0xd0] sm:$0xff] %v1259
        %1268 = vst [vmem:[#allocation2 + $0xd8] sm:$0xff] %v1260
        %1269 = vst [vmem:[#allocation2 + $0xe0] sm:$0xff] %v1261
        %1270 = vst [vmem:[#allocation2 + $0xe8] sm:$0xff] %v1262
        %1271 = vst [vmem:[#allocation2 + $0xf0] sm:$0xff] %v1263
        %1272 = vst [vmem:[#allocation2 + $0xf8] sm:$0xff] %v1264
        %1273 = vst [vmem:[#allocation2 + $0x100] sm:$0xff] %v1051
        %1274 = vst [vmem:[#allocation2 + $0x108] sm:$0xff] %v1052
        %1275 = vst [vmem:[#allocation2 + $0x110] sm:$0xff] %v1053
        %1276 = vst [vmem:[#allocation2 + $0x118] sm:$0xff] %v1054
        %1277 = vst [vmem:[#allocation2 + $0x120] sm:$0xff] %v1055
        %1278 = vst [vmem:[#allocation2 + $0x128] sm:$0xff] %v1056
        %1279 = vst [vmem:[#allocation2 + $0x130] sm:$0xff] %v1057
        %1280 = vst [vmem:[#allocation2 + $0x138] sm:$0xff] %v1058
        %1281 = vrot.lane.b32.xlu0 %v1051, 127
        %v1282 = vpop.permute.xlu0 %1281
        %1283 = vrot.lane.b32.xlu0 %v1053, 127
        %v1284 = vpop.permute.xlu0 %1283
        %1285 = vrot.lane.b32.xlu0 %v1055, 127
        %v1286 = vpop.permute.xlu0 %1285
        %1287 = vrot.lane.b32.xlu0 %v1057, 127
        %v1288 = vpop.permute.xlu0 %1287
        %1289 = vrot.lane.b32.xlu0 %v1052, 127
        %v1290 = vpop.permute.xlu0 %1289
        %1291 = vrot.lane.b32.xlu0 %v1054, 127
        %v1292 = vpop.permute.xlu0 %1291
        %1293 = vrot.lane.b32.xlu0 %v1056, 127
        %v1294 = vpop.permute.xlu0 %1293
        %1295 = vrot.lane.b32.xlu0 %v1058, 127
        %v1296 = vpop.permute.xlu0 %1295
        %vm1297 = vcmp.lt.s32.totalorder %v1076, 127
        %v1298 = vsel %vm1297, %v1282, %v1290
        %v1299 = vsel %vm1297, %v1284, %v1292
        %v1300 = vsel %vm1297, %v1286, %v1294
        %v1301 = vsel %vm1297, %v1288, %v1296
        %v1302 = vsel %vm1297, %v1290, %v1282
        %v1303 = vsel %vm1297, %v1292, %v1284
        %v1304 = vsel %vm1297, %v1294, %v1286
        %v1305 = vsel %vm1297, %v1296, %v1288
        %v1306 = vld [vmem:[%s624] ss:$8 sm:$0x3]
        %v1308 = vlaneseq
        %v1309 = vshrl.u32 %v1308, 7
        %v1310 = vsub.s32 0, %v1309
        %v1311 = vrot.slane %v1306, %v1310
        %v1312 = vlaneseq
        %v1313 = vshrl.u32 %v1312, 7
        %v1314 = vsub.s32 1, %v1313
        %v1315 = vrot.slane %v1306, %v1314
        %v1318 = vmul.f32 %v1311, %v1298
        %v1319 = vmul.f32 %v1315, %v1302
        %v1320 = vmul.f32 %v1311, %v1299
        %v1321 = vmul.f32 %v1315, %v1303
        %v1322 = vmul.f32 %v1311, %v1300
        %v1323 = vmul.f32 %v1315, %v1304
        %v1324 = vmul.f32 %v1311, %v1301
        %v1325 = vmul.f32 %v1315, %v1305
        %1326 = vst [vmem:[#allocation2 + $0x140] sm:$0xff] %v1318
        %1327 = vst [vmem:[#allocation2 + $0x148] sm:$0xff] %v1319
        %1328 = vst [vmem:[#allocation2 + $0x150] sm:$0xff] %v1320
        %1329 = vst [vmem:[#allocation2 + $0x158] sm:$0xff] %v1321
        %1330 = vst [vmem:[#allocation2 + $0x160] sm:$0xff] %v1322
        %1331 = vst [vmem:[#allocation2 + $0x168] sm:$0xff] %v1323
        %1332 = vst [vmem:[#allocation2 + $0x170] sm:$0xff] %v1324
        %1333 = vst [vmem:[#allocation2 + $0x178] sm:$0xff] %v1325
        %1334 = vrot.lane.b32.xlu0 %v1051, 121
        %v1335 = vpop.permute.xlu0 %1334
        %1336 = vrot.lane.b32.xlu0 %v1053, 121
        %v1337 = vpop.permute.xlu0 %1336
        %1338 = vrot.lane.b32.xlu0 %v1055, 121
        %v1339 = vpop.permute.xlu0 %1338
        %1340 = vrot.lane.b32.xlu0 %v1057, 121
        %v1341 = vpop.permute.xlu0 %1340
        %1342 = vrot.lane.b32.xlu0 %v1052, 121
        %v1343 = vpop.permute.xlu0 %1342
        %1344 = vrot.lane.b32.xlu0 %v1054, 121
        %v1345 = vpop.permute.xlu0 %1344
        %1346 = vrot.lane.b32.xlu0 %v1056, 121
        %v1347 = vpop.permute.xlu0 %1346
        %1348 = vrot.lane.b32.xlu0 %v1058, 121
        %v1349 = vpop.permute.xlu0 %1348
        %vm1350 = vcmp.lt.s32.totalorder %v1076, 121
        %v1351 = vsel %vm1350, %v1335, %v1343
        %v1352 = vsel %vm1350, %v1337, %v1345
        %v1353 = vsel %vm1350, %v1339, %v1347
        %v1354 = vsel %vm1350, %v1341, %v1349
        %v1355 = vsel %vm1350, %v1343, %v1335
        %v1356 = vsel %vm1350, %v1345, %v1337
        %v1357 = vsel %vm1350, %v1347, %v1339
        %v1358 = vsel %vm1350, %v1349, %v1341
        %v1359 = vld [vmem:[%s653] ss:$8 sm:$0x3]
        %v1361 = vlaneseq
        %v1362 = vshrl.u32 %v1361, 7
        %v1363 = vsub.s32 0, %v1362
        %v1364 = vrot.slane %v1359, %v1363
        %v1365 = vlaneseq
        %v1366 = vshrl.u32 %v1365, 7
        %v1367 = vsub.s32 1, %v1366
        %v1368 = vrot.slane %v1359, %v1367
        %v1371 = vmul.f32 %v1364, %v1351
        %v1372 = vmul.f32 %v1368, %v1355
        %v1373 = vmul.f32 %v1364, %v1352
        %v1374 = vmul.f32 %v1368, %v1356
        %v1375 = vmul.f32 %v1364, %v1353
        %v1376 = vmul.f32 %v1368, %v1357
        %v1377 = vmul.f32 %v1364, %v1354
        %v1378 = vmul.f32 %v1368, %v1358
        %1379 = vst [vmem:[#allocation2 + $0x180] sm:$0xff] %v1371
        %1380 = vst [vmem:[#allocation2 + $0x188] sm:$0xff] %v1372
        %1381 = vst [vmem:[#allocation2 + $0x190] sm:$0xff] %v1373
        %1382 = vst [vmem:[#allocation2 + $0x198] sm:$0xff] %v1374
        %1383 = vst [vmem:[#allocation2 + $0x1a0] sm:$0xff] %v1375
        %1384 = vst [vmem:[#allocation2 + $0x1a8] sm:$0xff] %v1376
        %1385 = vst [vmem:[#allocation2 + $0x1b0] sm:$0xff] %v1377
        %1386 = vst [vmem:[#allocation2 + $0x1b8] sm:$0xff] %v1378
        %1387 = vrot.lane.b32.xlu0 %v1051, 120
        %v1388 = vpop.permute.xlu0 %1387
        %1389 = vrot.lane.b32.xlu0 %v1053, 120
        %v1390 = vpop.permute.xlu0 %1389
        %1391 = vrot.lane.b32.xlu0 %v1055, 120
        %v1392 = vpop.permute.xlu0 %1391
        %1393 = vrot.lane.b32.xlu0 %v1057, 120
        %v1394 = vpop.permute.xlu0 %1393
        %1395 = vrot.lane.b32.xlu0 %v1052, 120
        %v1396 = vpop.permute.xlu0 %1395
        %1397 = vrot.lane.b32.xlu0 %v1054, 120
        %v1398 = vpop.permute.xlu0 %1397
        %1399 = vrot.lane.b32.xlu0 %v1056, 120
        %v1400 = vpop.permute.xlu0 %1399
        %1401 = vrot.lane.b32.xlu0 %v1058, 120
        %v1402 = vpop.permute.xlu0 %1401
        %vm1403 = vcmp.lt.s32.totalorder %v1076, 120
        %v1404 = vsel %vm1403, %v1388, %v1396
        %v1405 = vsel %vm1403, %v1390, %v1398
        %v1406 = vsel %vm1403, %v1392, %v1400
        %v1407 = vsel %vm1403, %v1394, %v1402
        %v1408 = vsel %vm1403, %v1396, %v1388
        %v1409 = vsel %vm1403, %v1398, %v1390
        %v1410 = vsel %vm1403, %v1400, %v1392
        %v1411 = vsel %vm1403, %v1402, %v1394
        %v1412 = vld [vmem:[%s682] ss:$8 sm:$0x3]
        %v1414 = vlaneseq
        %v1415 = vshrl.u32 %v1414, 7
        %v1416 = vsub.s32 0, %v1415
        %v1417 = vrot.slane %v1412, %v1416
        %v1418 = vlaneseq
        %v1419 = vshrl.u32 %v1418, 7
        %v1420 = vsub.s32 1, %v1419
        %v1421 = vrot.slane %v1412, %v1420
        %v1424 = vmul.f32 %v1417, %v1404
        %v1425 = vmul.f32 %v1421, %v1408
        %v1426 = vmul.f32 %v1417, %v1405
        %v1427 = vmul.f32 %v1421, %v1409
        %v1428 = vmul.f32 %v1417, %v1406
        %v1429 = vmul.f32 %v1421, %v1410
        %v1430 = vmul.f32 %v1417, %v1407
        %v1431 = vmul.f32 %v1421, %v1411
        %1432 = vst [vmem:[#allocation2 + $0x1c0] sm:$0xff] %v1424
        %1433 = vst [vmem:[#allocation2 + $0x1c8] sm:$0xff] %v1425
        %1434 = vst [vmem:[#allocation2 + $0x1d0] sm:$0xff] %v1426
        %1435 = vst [vmem:[#allocation2 + $0x1d8] sm:$0xff] %v1427
        %1436 = vst [vmem:[#allocation2 + $0x1e0] sm:$0xff] %v1428
        %1437 = vst [vmem:[#allocation2 + $0x1e8] sm:$0xff] %v1429
        %1438 = vst [vmem:[#allocation2 + $0x1f0] sm:$0xff] %v1430
        %1439 = vst [vmem:[#allocation2 + $0x1f8] sm:$0xff] %v1431
        %1440 = vrot.lane.b32.xlu0 %v1051, 119
        %v1441 = vpop.permute.xlu0 %1440
        %1442 = vrot.lane.b32.xlu0 %v1053, 119
        %v1443 = vpop.permute.xlu0 %1442
        %1444 = vrot.lane.b32.xlu0 %v1055, 119
        %v1445 = vpop.permute.xlu0 %1444
        %1446 = vrot.lane.b32.xlu0 %v1057, 119
        %v1447 = vpop.permute.xlu0 %1446
        %1448 = vrot.lane.b32.xlu0 %v1052, 119
        %v1449 = vpop.permute.xlu0 %1448
        %1450 = vrot.lane.b32.xlu0 %v1054, 119
        %v1451 = vpop.permute.xlu0 %1450
        %1452 = vrot.lane.b32.xlu0 %v1056, 119
        %v1453 = vpop.permute.xlu0 %1452
        %1454 = vrot.lane.b32.xlu0 %v1058, 119
        %v1455 = vpop.permute.xlu0 %1454
        %vm1456 = vcmp.lt.s32.totalorder %v1076, 119
        %v1457 = vsel %vm1456, %v1441, %v1449
        %v1458 = vsel %vm1456, %v1443, %v1451
        %v1459 = vsel %vm1456, %v1445, %v1453
        %v1460 = vsel %vm1456, %v1447, %v1455
        %v1461 = vsel %vm1456, %v1449, %v1441
        %v1462 = vsel %vm1456, %v1451, %v1443
        %v1463 = vsel %vm1456, %v1453, %v1445
        %v1464 = vsel %vm1456, %v1455, %v1447
        %v1465 = vld [vmem:[%s711] ss:$8 sm:$0x3]
        %v1467 = vlaneseq
        %v1468 = vshrl.u32 %v1467, 7
        %v1469 = vsub.s32 0, %v1468
        %v1470 = vrot.slane %v1465, %v1469
        %v1471 = vlaneseq
        %v1472 = vshrl.u32 %v1471, 7
        %v1473 = vsub.s32 1, %v1472
        %v1474 = vrot.slane %v1465, %v1473
        %v1477 = vmul.f32 %v1470, %v1457
        %v1478 = vmul.f32 %v1474, %v1461
        %v1479 = vmul.f32 %v1470, %v1458
        %v1480 = vmul.f32 %v1474, %v1462
        %v1481 = vmul.f32 %v1470, %v1459
        %v1482 = vmul.f32 %v1474, %v1463
        %v1483 = vmul.f32 %v1470, %v1460
        %v1484 = vmul.f32 %v1474, %v1464
        %1485 = vst [vmem:[#allocation2 + $0x200] sm:$0xff] %v1477
        %1486 = vst [vmem:[#allocation2 + $0x208] sm:$0xff] %v1478
        %1487 = vst [vmem:[#allocation2 + $0x210] sm:$0xff] %v1479
        %1488 = vst [vmem:[#allocation2 + $0x218] sm:$0xff] %v1480
        %1489 = vst [vmem:[#allocation2 + $0x220] sm:$0xff] %v1481
        %1490 = vst [vmem:[#allocation2 + $0x228] sm:$0xff] %v1482
        %1491 = vst [vmem:[#allocation2 + $0x230] sm:$0xff] %v1483
        %1492 = vst [vmem:[#allocation2 + $0x238] sm:$0xff] %v1484
        %v1493 = vld [vmem:[#allocation8] sm:$0xff]
        %v1494 = vld [vmem:[#allocation8 + $0x8] sm:$0xff]
        %v1495 = vld [vmem:[#allocation8 + $0x10] sm:$0xff]
        %v1496 = vld [vmem:[#allocation8 + $0x18] sm:$0xff]
        %v1497 = vld [vmem:[#allocation8 + $0x20] sm:$0xff]
        %v1498 = vld [vmem:[#allocation8 + $0x28] sm:$0xff]
        %v1499 = vld [vmem:[#allocation8 + $0x30] sm:$0xff]
        %v1500 = vld [vmem:[#allocation8 + $0x38] sm:$0xff]
        %v1501 = vld [vmem:[#allocation8 + $0x40] sm:$0xff]
        %v1502 = vld [vmem:[#allocation8 + $0x48] sm:$0xff]
        %v1503 = vld [vmem:[#allocation8 + $0x50] sm:$0xff]
        %v1504 = vld [vmem:[#allocation8 + $0x58] sm:$0xff]
        %v1505 = vld [vmem:[#allocation2] sm:$0xff]
        %v1506 = vld [vmem:[#allocation2 + $0x8] sm:$0xff]
        %v1507 = vld [vmem:[#allocation2 + $0x10] sm:$0xff]
        %v1508 = vld [vmem:[#allocation2 + $0x18] sm:$0xff]
        %v1509 = vld [vmem:[#allocation2 + $0x20] sm:$0xff]
        %v1510 = vld [vmem:[#allocation2 + $0x28] sm:$0xff]
        %v1511 = vld [vmem:[#allocation2 + $0x30] sm:$0xff]
        %v1512 = vld [vmem:[#allocation2 + $0x38] sm:$0xff]
        %v1513 = vld [vmem:[#allocation2 + $0x40] sm:$0xff]
        %v1514 = vld [vmem:[#allocation2 + $0x48] sm:$0xff]
        %v1515 = vld [vmem:[#allocation2 + $0x50] sm:$0xff]
        %v1516 = vld [vmem:[#allocation2 + $0x58] sm:$0xff]
        %v1517 = vld [vmem:[#allocation2 + $0x60] sm:$0xff]
        %v1518 = vld [vmem:[#allocation2 + $0x68] sm:$0xff]
        %v1519 = vld [vmem:[#allocation2 + $0x70] sm:$0xff]
        %v1520 = vld [vmem:[#allocation2 + $0x78] sm:$0xff]
        %v1521 = vld [vmem:[#allocation2 + $0x80] sm:$0xff]
        %v1522 = vld [vmem:[#allocation2 + $0x88] sm:$0xff]
        %v1523 = vld [vmem:[#allocation2 + $0x90] sm:$0xff]
        %v1524 = vld [vmem:[#allocation2 + $0x98] sm:$0xff]
        %v1525 = vld [vmem:[#allocation2 + $0xa0] sm:$0xff]
        %v1526 = vld [vmem:[#allocation2 + $0xa8] sm:$0xff]
        %v1527 = vld [vmem:[#allocation2 + $0xb0] sm:$0xff]
        %v1528 = vld [vmem:[#allocation2 + $0xb8] sm:$0xff]
        %v1529 = vld [vmem:[#allocation2 + $0xc0] sm:$0xff]
        %v1530 = vld [vmem:[#allocation2 + $0xc8] sm:$0xff]
        %v1531 = vld [vmem:[#allocation2 + $0xd0] sm:$0xff]
        %v1532 = vld [vmem:[#allocation2 + $0xd8] sm:$0xff]
        %v1533 = vld [vmem:[#allocation2 + $0xe0] sm:$0xff]
        %v1534 = vld [vmem:[#allocation2 + $0xe8] sm:$0xff]
        %v1535 = vld [vmem:[#allocation2 + $0xf0] sm:$0xff]
        %v1536 = vld [vmem:[#allocation2 + $0xf8] sm:$0xff]
        %v1537 = vld [vmem:[#allocation2 + $0x100] sm:$0xff]
        %v1538 = vld [vmem:[#allocation2 + $0x108] sm:$0xff]
        %v1539 = vld [vmem:[#allocation2 + $0x110] sm:$0xff]
        %v1540 = vld [vmem:[#allocation2 + $0x118] sm:$0xff]
        %v1541 = vld [vmem:[#allocation2 + $0x120] sm:$0xff]
        %v1542 = vld [vmem:[#allocation2 + $0x128] sm:$0xff]
        %v1543 = vld [vmem:[#allocation2 + $0x130] sm:$0xff]
        %v1544 = vld [vmem:[#allocation2 + $0x138] sm:$0xff]
        %v1545 = vld [vmem:[#allocation2 + $0x140] sm:$0xff]
        %v1546 = vld [vmem:[#allocation2 + $0x148] sm:$0xff]
        %v1547 = vld [vmem:[#allocation2 + $0x150] sm:$0xff]
        %v1548 = vld [vmem:[#allocation2 + $0x158] sm:$0xff]
        %v1549 = vld [vmem:[#allocation2 + $0x160] sm:$0xff]
        %v1550 = vld [vmem:[#allocation2 + $0x168] sm:$0xff]
        %v1551 = vld [vmem:[#allocation2 + $0x170] sm:$0xff]
        %v1552 = vld [vmem:[#allocation2 + $0x178] sm:$0xff]
        %v1553 = vld [vmem:[#allocation2 + $0x180] sm:$0xff]
        %v1554 = vld [vmem:[#allocation2 + $0x188] sm:$0xff]
        %v1555 = vld [vmem:[#allocation2 + $0x190] sm:$0xff]
        %v1556 = vld [vmem:[#allocation2 + $0x198] sm:$0xff]
        %v1557 = vld [vmem:[#allocation2 + $0x1a0] sm:$0xff]
        %v1558 = vld [vmem:[#allocation2 + $0x1a8] sm:$0xff]
        %v1559 = vld [vmem:[#allocation2 + $0x1b0] sm:$0xff]
        %v1560 = vld [vmem:[#allocation2 + $0x1b8] sm:$0xff]
        %v1561 = vld [vmem:[#allocation2 + $0x1c0] sm:$0xff]
        %v1562 = vld [vmem:[#allocation2 + $0x1c8] sm:$0xff]
        %v1563 = vld [vmem:[#allocation2 + $0x1d0] sm:$0xff]
        %v1564 = vld [vmem:[#allocation2 + $0x1d8] sm:$0xff]
        %v1565 = vld [vmem:[#allocation2 + $0x1e0] sm:$0xff]
        %v1566 = vld [vmem:[#allocation2 + $0x1e8] sm:$0xff]
        %v1567 = vld [vmem:[#allocation2 + $0x1f0] sm:$0xff]
        %v1568 = vld [vmem:[#allocation2 + $0x1f8] sm:$0xff]
        %v1569 = vld [vmem:[#allocation2 + $0x200] sm:$0xff]
        %v1570 = vld [vmem:[#allocation2 + $0x208] sm:$0xff]
        %v1571 = vld [vmem:[#allocation2 + $0x210] sm:$0xff]
        %v1572 = vld [vmem:[#allocation2 + $0x218] sm:$0xff]
        %v1573 = vld [vmem:[#allocation2 + $0x220] sm:$0xff]
        %v1574 = vld [vmem:[#allocation2 + $0x228] sm:$0xff]
        %v1575 = vld [vmem:[#allocation2 + $0x230] sm:$0xff]
        %v1576 = vld [vmem:[#allocation2 + $0x238] sm:$0xff]
        %1577 = vset.pattern.permute.xlu0 1
        %1578 = vperm.xlu0 %1577, %v361
        %v1579 = vpop.permute.xlu0 %1578
        %1581 = vset.pattern.permute.xlu0 1
        %1582 = vperm.xlu0 %1581, %v362
        %v1583 = vpop.permute.xlu0 %1582
        %1585 = vset.pattern.permute.xlu0 1
        %1586 = vperm.xlu0 %1585, %v363
        %v1587 = vpop.permute.xlu0 %1586
        %1589 = vset.pattern.permute.xlu0 1
        %1590 = vperm.xlu0 %1589, %v364
        %v1591 = vpop.permute.xlu0 %1590
        %v1594 = vsel %vm844, %v1495, 0
        %v1597 = vsel %vm844, %v1498, 0
        %v1600 = vsel %vm844, %v1501, 0
        %v1603 = vsel %vm844, %v1504, 0
        %1605 = vmatprep.subr.mxu0 %v1506
        %1606 = vmatpush1.msra.mxu0 %v1505
        %1607 = vmatprep.subr.mxu0 %v1508
        %1608 = vmatpush1.msra.mxu0 %v1507
        %1609 = vmatprep.subr.mxu0 %v1510
        %1610 = vmatpush1.msra.mxu0 %v1509
        %1611 = vmatprep.subr.mxu0 %v1512
        %1612 = vmatpush1.msra.mxu0 %v1511
        %1613 = vmatprep.subr.mxu0 %v1514
        %1614 = vmatpush1.msra.mxu0 %v1513
        %1615 = vmatprep.subr.mxu0 %v1516
        %1616 = vmatpush1.msra.mxu0 %v1515
        %1617 = vmatprep.subr.mxu0 %v1518
        %1618 = vmatpush1.msra.mxu0 %v1517
        %1619 = vmatprep.subr.mxu0 %v1520
        %1620 = vmatpush1.msra.mxu0 %v1519
        %1621 = vmatprep.subr.mxu0 %v1522
        %1622 = vmatpush1.msra.mxu0 %v1521
        %1623 = vmatprep.subr.mxu0 %v1524
        %1624 = vmatpush1.msra.mxu0 %v1523
        %1625 = vmatprep.subr.mxu0 %v1526
        %1626 = vmatpush1.msra.mxu0 %v1525
        %1627 = vmatprep.subr.mxu0 %v1528
        %1628 = vmatpush1.msra.mxu0 %v1527
        %1629 = vmatprep.subr.mxu0 %v1530
        %1630 = vmatpush1.msra.mxu0 %v1529
        %1631 = vmatprep.subr.mxu0 %v1532
        %1632 = vmatpush1.msra.mxu0 %v1531
        %1633 = vmatprep.subr.mxu0 %v1534
        %1634 = vmatpush1.msra.mxu0 %v1533
        %1635 = vmatprep.subr.mxu0 %v1536
        %1636 = vmatpush1.msra.mxu0 %v1535
        %1637 = vmatprep.subr.mxu0 %v1538
        %1638 = vmatpush1.msra.mxu0 %v1537
        %1639 = vmatprep.subr.mxu0 %v1540
        %1640 = vmatpush1.msra.mxu0 %v1539
        %1641 = vmatprep.subr.mxu0 %v1542
        %1642 = vmatpush1.msra.mxu0 %v1541
        %1643 = vmatprep.subr.mxu0 %v1544
        %1644 = vmatpush1.msra.mxu0 %v1543
        %1645 = vmatprep.subr.mxu0 %v1546
        %1646 = vmatpush1.msra.mxu0 %v1545
        %1647 = vmatprep.subr.mxu0 %v1548
        %1648 = vmatpush1.msra.mxu0 %v1547
        %1649 = vmatprep.subr.mxu0 %v1550
        %1650 = vmatpush1.msra.mxu0 %v1549
        %1651 = vmatprep.subr.mxu0 %v1552
        %1652 = vmatpush1.msra.mxu0 %v1551
        %1653 = vmatprep.subr.mxu0 %v1554
        %1654 = vmatpush1.msra.mxu0 %v1553
        %1655 = vmatprep.subr.mxu0 %v1556
        %1656 = vmatpush1.msra.mxu0 %v1555
        %1657 = vmatprep.subr.mxu0 %v1558
        %1658 = vmatpush1.msra.mxu0 %v1557
        %1659 = vmatprep.subr.mxu0 %v1560
        %1660 = vmatpush1.msra.mxu0 %v1559
        %1661 = vmatprep.subr.mxu0 %v1562
        %1662 = vmatpush1.msra.mxu0 %v1561
        %1663 = vmatprep.subr.mxu0 %v1564
        %1664 = vmatpush1.msra.mxu0 %v1563
        %1665 = vmatprep.subr.mxu0 %v1566
        %1666 = vmatpush1.msra.mxu0 %v1565
        %1667 = vmatprep.subr.mxu0 %v1568
        %1668 = vmatpush1.msra.mxu0 %v1567
        %1669 = vmatprep.mubr.f32.mxu0 %v1494
        %1670 = vmatmul.mubr.f32.gmra.mrb[0].mxu0 %v1493
        %v1671 = vpop.f32.mrb[0].mxu0
        %v1672 = vadd.f32 %v1579, %v1671
        %v1673 = vpop.f32.mrb[0].mxu0
        %v1674 = vadd.f32 %v1579, %v1673
        %1675 = vmatprep.mubr.f32.mxu0 %v1497
        %1676 = vmatmul.mubr.f32.gmra.mrb[0].mxu0 %v1496
        %v1677 = vpop.f32.mrb[0].mxu0
        %v1678 = vadd.f32 %v1583, %v1677
        %v1679 = vpop.f32.mrb[0].mxu0
        %v1680 = vadd.f32 %v1583, %v1679
        %1681 = vmatprep.mubr.f32.mxu0 %v1500
        %1682 = vmatmul.mubr.f32.gmra.mrb[0].mxu0 %v1499
        %v1683 = vpop.f32.mrb[0].mxu0
        %v1684 = vadd.f32 %v1587, %v1683
        %v1685 = vpop.f32.mrb[0].mxu0
        %v1686 = vadd.f32 %v1587, %v1685
        %1687 = vmatprep.mubr.f32.mxu0 %v1503
        %1688 = vmatmul.mubr.f32.gmra.mrb[0].mxu0 %v1502
        %v1689 = vpop.f32.mrb[0].mxu0
        %v1690 = vadd.f32 %v1591, %v1689
        %v1691 = vpop.f32.mrb[0].mxu0
        %v1692 = vadd.f32 %v1591, %v1691
        %1693 = vdwg.mxu0
        %1694 = vmatprep.subr.mxu0 %v1570
        %1695 = vmatpush1.msra.mxu0 %v1569
        %1696 = vmatprep.subr.mxu0 %v1572
        %1697 = vmatpush1.msra.mxu0 %v1571
        %1698 = vmatprep.subr.mxu0 %v1574
        %1699 = vmatpush1.msra.mxu0 %v1573
        %1700 = vmatprep.subr.mxu0 %v1576
        %1701 = vmatpush1.msra.mxu0 %v1575
        %1702 = vmatprep.subr.mxu0 0.0
        %1703 = vmatpush1.msra.mxu0 0.0
        %1704 = vmatprep.subr.mxu0 0.0
        %1705 = vmatpush1.msra.mxu0 0.0
        %1706 = vmatprep.subr.mxu0 0.0
        %1707 = vmatpush1.msra.mxu0 0.0
        %1708 = vmatprep.subr.mxu0 0.0
        %1709 = vmatpush1.msra.mxu0 0.0
        %1710 = vmatprep.subr.mxu0 0.0
        %1711 = vmatpush1.msra.mxu0 0.0
        %1712 = vmatprep.subr.mxu0 0.0
        %1713 = vmatpush1.msra.mxu0 0.0
        %1714 = vmatprep.subr.mxu0 0.0
        %1715 = vmatpush1.msra.mxu0 0.0
        %1716 = vmatprep.subr.mxu0 0.0
        %1717 = vmatpush1.msra.mxu0 0.0
        %1718 = vmatprep.subr.mxu0 0.0
        %1719 = vmatpush1.msra.mxu0 0.0
        %1720 = vmatprep.subr.mxu0 0.0
        %1721 = vmatpush1.msra.mxu0 0.0
        %1722 = vmatprep.subr.mxu0 0.0
        %1723 = vmatpush1.msra.mxu0 0.0
        %1724 = vmatprep.subr.mxu0 0.0
        %1725 = vmatpush1.msra.mxu0 0.0
        %1726 = vmatprep.subr.mxu0 0.0
        %1727 = vmatpush1.msra.mxu0 0.0
        %1728 = vmatprep.subr.mxu0 0.0
        %1729 = vmatpush1.msra.mxu0 0.0
        %1730 = vmatprep.subr.mxu0 0.0
        %1731 = vmatpush1.msra.mxu0 0.0
        %1732 = vmatprep.subr.mxu0 0.0
        %1733 = vmatpush1.msra.mxu0 0.0
        %1734 = vmatprep.subr.mxu0 0.0
        %1735 = vmatpush1.msra.mxu0 0.0
        %1736 = vmatprep.subr.mxu0 0.0
        %1737 = vmatpush1.msra.mxu0 0.0
        %1738 = vmatprep.subr.mxu0 0.0
        %1739 = vmatpush1.msra.mxu0 0.0
        %1740 = vmatprep.subr.mxu0 0.0
        %1741 = vmatpush1.msra.mxu0 0.0
        %1742 = vmatprep.subr.mxu0 0.0
        %1743 = vmatpush1.msra.mxu0 0.0
        %1744 = vmatprep.subr.mxu0 0.0
        %1745 = vmatpush1.msra.mxu0 0.0
        %1746 = vmatprep.subr.mxu0 0.0
        %1747 = vmatpush1.msra.mxu0 0.0
        %1748 = vmatprep.subr.mxu0 0.0
        %1749 = vmatpush1.msra.mxu0 0.0
        %1750 = vmatprep.subr.mxu0 0.0
        %1751 = vmatpush1.msra.mxu0 0.0
        %1752 = vmatprep.subr.mxu0 0.0
        %1753 = vmatpush1.msra.mxu0 0.0
        %1754 = vmatprep.subr.mxu0 0.0
        %1755 = vmatpush1.msra.mxu0 0.0
        %1756 = vmatprep.subr.mxu0 0.0
        %1757 = vmatpush1.msra.mxu0 0.0
        %1758 = vmatprep.mubr.f32.mxu0 0.0
        %1759 = vmatmul.mubr.f32.gmra.mrb[0].mxu0 %v1594
        %v1760 = vpop.f32.mrb[0].mxu0
        %v1761 = vadd.f32 %v1672, %v1760
        %v1762 = vpop.f32.mrb[0].mxu0
        %v1763 = vadd.f32 %v1674, %v1762
        %1764 = vmatprep.mubr.f32.mxu0 0.0
        %1765 = vmatmul.mubr.f32.gmra.mrb[0].mxu0 %v1597
        %v1766 = vpop.f32.mrb[0].mxu0
        %v1767 = vadd.f32 %v1678, %v1766
        %v1768 = vpop.f32.mrb[0].mxu0
        %v1769 = vadd.f32 %v1680, %v1768
        %1770 = vmatprep.mubr.f32.mxu0 0.0
        %1771 = vmatmul.mubr.f32.gmra.mrb[0].mxu0 %v1600
        %v1772 = vpop.f32.mrb[0].mxu0
        %v1773 = vadd.f32 %v1684, %v1772
        %v1774 = vpop.f32.mrb[0].mxu0
        %v1775 = vadd.f32 %v1686, %v1774
        %1776 = vmatprep.mubr.f32.mxu0 0.0
        %1777 = vmatmul.mubr.f32.gmra.mrb[0].mxu0 %v1603
        %v1778 = vpop.f32.mrb[0].mxu0
        %v1779 = vadd.f32 %v1690, %v1778
        %v1780 = vpop.f32.mrb[0].mxu0
        %v1781 = vadd.f32 %v1692, %v1780
        %1782 = vdwg.mxu0
        %v1783 = vmax.f32 %v1761, 0.0
        %v1784 = vmax.f32 %v1763, 0.0
        %v1785 = vmax.f32 %v1767, 0.0
        %v1786 = vmax.f32 %v1769, 0.0
        %v1787 = vmax.f32 %v1773, 0.0
        %v1788 = vmax.f32 %v1775, 0.0
        %v1789 = vmax.f32 %v1779, 0.0
        %v1790 = vmax.f32 %v1781, 0.0
        %1791 = vst [vmem:[%s346] sm:$0xff] %v1783
        %1792 = vst [vmem:[%s346 + $0x8] sm:$0xff] %v1784
        %1793 = vst [vmem:[%s346 + $0x10] sm:$0xff] %v1785
        %1794 = vst [vmem:[%s346 + $0x18] sm:$0xff] %v1786
        %1795 = vst [vmem:[%s346 + $0x20] sm:$0xff] %v1787
        %1796 = vst [vmem:[%s346 + $0x28] sm:$0xff] %v1788
        %1797 = vst [vmem:[%s346 + $0x30] sm:$0xff] %v1789
        %1798 = vst [vmem:[%s346 + $0x38] sm:$0xff] %v1790
        %1799 = vset.pattern.permute.xlu0 2
        %1800 = vperm.xlu0 %1799, %v361
        %v1801 = vpop.permute.xlu0 %1800
        %1803 = vset.pattern.permute.xlu0 2
        %1804 = vperm.xlu0 %1803, %v362
        %v1805 = vpop.permute.xlu0 %1804
        %1807 = vset.pattern.permute.xlu0 2
        %1808 = vperm.xlu0 %1807, %v363
        %v1809 = vpop.permute.xlu0 %1808
        %1811 = vset.pattern.permute.xlu0 2
        %1812 = vperm.xlu0 %1811, %v364
        %v1813 = vpop.permute.xlu0 %1812
        %v1815 = vmul.f32 %v1783, %v1801
        %v1816 = vmul.f32 %v1784, %v1801
        %v1817 = vmul.f32 %v1785, %v1805
        %v1818 = vmul.f32 %v1786, %v1805
        %v1819 = vmul.f32 %v1787, %v1809
        %v1820 = vmul.f32 %v1788, %v1809
        %v1821 = vmul.f32 %v1789, %v1813
        %v1822 = vmul.f32 %v1790, %v1813
        %v1823 = vadd.f32 %v1815, %v1817
        %v1824 = vadd.f32 %v1823, %v1819
        %v1825 = vadd.f32 %v1824, %v1821
        %v1826 = vrot.slane %v1825, 4
        %v1827 = vadd.f32 %v1825, %v1826
        %v1828 = vrot.slane %v1827, 2
        %v1829 = vadd.f32 %v1827, %v1828
        %v1830 = vrot.slane %v1829, 1
        %v1831 = vadd.f32 %v1829, %v1830
        %v1832 = vadd.f32 %v1816, %v1818
        %v1833 = vadd.f32 %v1832, %v1820
        %v1834 = vadd.f32 %v1833, %v1822
        %v1835 = vrot.slane %v1834, 4
        %v1836 = vadd.f32 %v1834, %v1835
        %v1837 = vrot.slane %v1836, 2
        %v1838 = vadd.f32 %v1836, %v1837
        %v1839 = vrot.slane %v1838, 1
        %v1840 = vadd.f32 %v1838, %v1839
        %1842 = vset.pattern.permute.xlu0 3
        %1843 = vperm.xlu0 %1842, %v365
        %v1844 = vpop.permute.xlu0 %1843
        %v1846 = vadd.f32 %v1831, %v1844
        %v1847 = vadd.f32 %v1840, %v1844
        %v1850 = vcombine.low %v1846, %v1847
        %v1852 = vunpack.c.l.s4 1966171168
        %v1853 = vunpack.c.0.s8 %v1852
        %v1854 = vlaneseq
        %v1855 = vshrl.u32 %v1854, 7
        %v1856 = vsub.s32 %v1853, %v1855
        %v1857 = vrot.slane %v1850, %v1856
        %v1859 = vunpack.c.l.s4 1966171168
        %v1860 = vunpack.c.0.s8 %v1859
        %v1861 = vlaneseq
        %v1862 = vshrl.u32 %v1861, 7
        %v1863 = vsub.s32 %v1860, %v1862
        %v1864 = vrot.slane %v1857, %v1863
        %v1866 = vlaneseq
        %vm1867 = vcmp.ge.s32.totalorder %v1866, 0
        %vm1868 = vcmp.lt.s32.totalorder %v1866, 256
        %vm1869 = vmand %vm1867, %vm1868
        %1870 = vst.msk [vmem:[%s353] sm:$0x3] %vm1869, %v1864
        %s1871 = sand.u32 %s188, 1
        %s1872 = scalar_lea.sflag [#allocation5], %s1871
        %s1873 = sand.u32 %s188, 1
        %s1874 = smul.addr %s1873, 64
        %s1875 = scalar_lea.vmem [#allocation9], %s1874
        %s1876 = sand.u32 %s214, 1
        %s1877 = scalar_lea.sflag [#allocation11], %s1876
        %s1878 = sand.u32 %s214, 1
        %s1879 = smul.addr %s1878, 2
        %s1880 = scalar_lea.vmem [#allocation10], %s1879
        // Predicated region
        $region61: #{tpu_custom_call.1} parent=47 // pred_check
          %p1881 = pneg %p198
        $region62: #{tpu_custom_call.1} parent=47 // pred_check_branch
          %1883 = sbr.rel (%p1881) target = $region64
        $region63: #{tpu_custom_call.1} parent=47 // pred_region
          %s1884 = smul.u32 2, %s28
          %s1886 = ssub.s32 1024, 1024
          %1887 = vsyncadd %s1872, %s1886
          %s1888 = smul.addr %s1884, 128
          %s1889 = scalar_lea.hbm %s7, %s1888
          %s1890 = sshll.u32 %s1875, 4
          %s1891 = int_to_ptr.vmem [resolvable:$true] %s1890
          %1896 = dma.vmem_to_hbm [thread:$0]  %s1891, 1024, %s1889, %s1872, 256, 512, 16
        $region64: #{tpu_custom_call.1} parent=47 // pred_fallthru
          _
        // Predicated region
        $region65: #{tpu_custom_call.1} parent=47 // pred_check
          %p1897 = pneg %p224
        $region66: #{tpu_custom_call.1} parent=47 // pred_check_branch
          %1899 = sbr.rel (%p1897) target = $region68
        $region67: #{tpu_custom_call.1} parent=47 // pred_region
          %s1900 = smul.u32 2, %s28
          %s1902 = ssub.s32 32, 32
          %1903 = vsyncadd %s1877, %s1902
          %s1904 = smul.addr %s1900, 16
          %s1905 = scalar_lea.hbm %s8, %s1904
          %s1907 = sshll.u32 %s1880, 4
          %s1908 = int_to_ptr.vmem [resolvable:$true] %s1907
          %1910 = dma.vmem_to_hbm [thread:$0]  %s1908, 32, %s1905, %s1877
        $region68: #{tpu_custom_call.1} parent=47 // pred_fallthru
          _
      $region48: #{tpu_custom_call.1} parent=5 // pred_fallthru
        _
      %p1911 = scmp.le.s32.totalorder 2, %s23
      // Predicated region
      $region69: #{tpu_custom_call.1} parent=5 // pred_check
        %p1912 = pneg %p1911
      $region70: #{tpu_custom_call.1} parent=5 // pred_check_branch
        %1914 = sbr.rel (%p1912) target = $region72
      $region71: #{tpu_custom_call.1} parent=5 // pred_region
        %s1915 = ssub.s32 %s23, 2
        // Predicated region
        $region73: #{tpu_custom_call.1} parent=71 // pred_check
          %p1916 = pneg %p204
        $region74: #{tpu_custom_call.1} parent=71 // pred_check_branch
          %1918 = sbr.rel (%p1916) target = $region76
        $region75: #{tpu_custom_call.1} parent=71 // pred_region
          %s1919 = sand.u32 %s189, 1
          %s1920 = scalar_lea.sflag [#allocation5], %s1919
          %s1921 = sand.u32 %s189, 1
          %s1922 = smul.addr %s1921, 64
          %s1923 = scalar_lea.vmem [#allocation9], %s1922
          %1924 = dma.done %s1920, 1024
        $region76: #{tpu_custom_call.1} parent=71 // pred_fallthru
          _
        // Predicated region
        $region77: #{tpu_custom_call.1} parent=71 // pred_check
          %p1925 = pneg %p230
        $region78: #{tpu_custom_call.1} parent=71 // pred_check_branch
          %1927 = sbr.rel (%p1925) target = $region80
        $region79: #{tpu_custom_call.1} parent=71 // pred_region
          %s1928 = sand.u32 %s215, 1
          %s1929 = scalar_lea.sflag [#allocation11], %s1928
          %s1930 = sand.u32 %s215, 1
          %s1931 = smul.addr %s1930, 2
          %s1932 = scalar_lea.vmem [#allocation10], %s1931
          %1933 = dma.done %s1929, 32
        $region80: #{tpu_custom_call.1} parent=71 // pred_fallthru
          _
      $region72: #{tpu_custom_call.1} parent=5 // pred_fallthru
        _
    $region6: #{tpu_custom_call.1} parent=1 // loop_footer
      %s27 = sadd.s32 1, %s23
    $region7: #{tpu_custom_call.1} parent=1 // loop_footer_branch
      %22 = sbr.rel target = $region3
    $region8: #{tpu_custom_call.1} parent=1 // loop_exit
      _
    %1934 = vsyncpa [#allocation4], 1
    %s1935 = scalar_lea.sflag [#allocation4], 1
    %1936 = vsyncpa %s1935, 1
    %1937 = vsyncpa [#allocation7], 1
    %1938 = vsyncpa [#allocation5], 1
    %s1939 = scalar_lea.sflag [#allocation5], 1
    %1940 = vsyncpa %s1939, 1
    %1941 = vsyncpa [#allocation11], 1
    %s1942 = scalar_lea.sflag [#allocation11], 1
    %1943 = vsyncpa %s1942, 1

</llo_original>
